<compile_context>
chip_gen: v7x
topology: tpu7x:2x2x1
jax: 0.10.0
libtpu: 0.0.40
codegen_flags: <defaults>
</compile_context>

<pallas_src>
import math
import functools

import jax
import jax.numpy as jnp
from jax import lax
from jax.experimental import pallas as pl
from jax.experimental.pallas import tpu as pltpu


def _flash_attn_kernel(q_ref, k_ref, v_ref,
                       wq_ref, bq_ref, wk_ref, bk_ref,
                       wv_ref, bv_ref, wo_ref, bo_ref,
                       out_ref,
                       q_sc, m_sc, l_sc, acc_sc,
                       *, n_heads, d_k):
    ki = pl.program_id(2)
    n_kv = pl.num_programs(2)

    @pl.when(ki == 0)
    def _init():
        # Q projection for this query tile (scale already folded into wq/bq).
        qp = jnp.dot(q_ref[...].astype(jnp.bfloat16), wq_ref[...],
                     preferred_element_type=jnp.float32) + bq_ref[...]
        q_sc[...] = qp.astype(jnp.bfloat16)
        m_sc[...] = jnp.full(m_sc.shape, -jnp.inf, dtype=m_sc.dtype)
        l_sc[...] = jnp.zeros(l_sc.shape, dtype=l_sc.dtype)
        acc_sc[...] = jnp.zeros(acc_sc.shape, dtype=acc_sc.dtype)

    # K / V projections for the current key/value tile (row-wise => tileable).
    kp = (jnp.dot(k_ref[...].astype(jnp.bfloat16), wk_ref[...],
                  preferred_element_type=jnp.float32)
          + bk_ref[...]).astype(jnp.bfloat16)                       # [TKV, D]
    vp = (jnp.dot(v_ref[...].astype(jnp.bfloat16), wv_ref[...],
                  preferred_element_type=jnp.float32)
          + bv_ref[...]).astype(jnp.bfloat16)                       # [TKV, D]

    # Contract last dims of both operands (Q @ K^T without an explicit transpose).
    contract_last = (((1,), (1,)), ((), ()))

    for h in range(n_heads):
        lo = h * d_k
        qh = q_sc[:, lo:lo + d_k]                                   # [TQ, dk] bf16
        kh = kp[:, lo:lo + d_k]                                     # [TKV, dk] bf16
        vh = vp[:, lo:lo + d_k]                                     # [TKV, dk] bf16

        s = lax.dot_general(qh, kh, contract_last,
                            preferred_element_type=jnp.float32)     # [TQ, TKV] (pre-scaled)

        m_prev = m_sc[h]                                            # [TQ, 1]
        m_new = jnp.maximum(m_prev, jnp.max(s, axis=-1, keepdims=True))
        alpha = jnp.exp(m_prev - m_new)
        p = jnp.exp(s - m_new)                                      # [TQ, TKV] f32
        l_sc[h] = alpha * l_sc[h] + jnp.sum(p, axis=-1, keepdims=True)
        acc_sc[h] = alpha * acc_sc[h] + jnp.dot(p.astype(jnp.bfloat16), vh,
                                                preferred_element_type=jnp.float32)
        m_sc[h] = m_new

    @pl.when(ki == n_kv - 1)
    def _finalize():
        out = jnp.zeros(out_ref.shape, jnp.float32)                 # [TQ, D]
        for h in range(n_heads):
            lo = h * d_k
            inv_l = pl.reciprocal(l_sc[h], approx=True)             # [TQ, 1]
            ctx_h = (acc_sc[h] * inv_l).astype(jnp.bfloat16)        # [TQ, dk]
            # Fold head context directly into the output projection.
            out = out + jnp.dot(ctx_h, wo_ref[lo:lo + d_k, :],
                                preferred_element_type=jnp.float32)
        out_ref[...] = (out + bo_ref[...]).astype(out_ref.dtype)


def _pick_tile(n, prefs=(256, 128)):
    for p in prefs:
        if n % p == 0:
            return p
    return n  # full extent (always legal as a block dim)


def custom_attention(query, key, value, params, *, n_heads, attention_scale=None):
    """query/key/value: [B, S, D]; params: W_{q,k,v,o} [D,D] (out,in), b_{q,k,v,o} [D]."""
    B, Sq, D = query.shape
    Skv = key.shape[1]
    assert D % n_heads == 0
    d_k = D // n_heads
    scale = attention_scale if attention_scale is not None else 1.0 / math.sqrt(d_k)

    tq = _pick_tile(Sq)
    tkv = _pick_tile(Skv)
    n_q = Sq // tq
    n_kv = Skv // tkv

    # Host-side weight packing: pre-transpose so the kernel computes x @ W,
    # cast to bf16 for the MXU, fold the attention scale into the Q projection.
    wq_t = (params["W_q"].T * scale).astype(jnp.bfloat16)
    wk_t = params["W_k"].T.astype(jnp.bfloat16)
    wv_t = params["W_v"].T.astype(jnp.bfloat16)
    wo_t = params["W_o"].T.astype(jnp.bfloat16)
    bq = (params["b_q"] * scale).reshape(1, D).astype(jnp.float32)
    bk = params["b_k"].reshape(1, D).astype(jnp.float32)
    bv = params["b_v"].reshape(1, D).astype(jnp.float32)
    bo = params["b_o"].reshape(1, D).astype(jnp.float32)

    q_spec = pl.BlockSpec((pl.Squeezed(), tq, D), lambda b, qi, ki: (b, qi, 0))
    kv_spec = pl.BlockSpec((pl.Squeezed(), tkv, D), lambda b, qi, ki: (b, ki, 0))
    w_spec = pl.BlockSpec((D, D), lambda b, qi, ki: (0, 0))
    b_spec = pl.BlockSpec((1, D), lambda b, qi, ki: (0, 0))
    out_spec = pl.BlockSpec((pl.Squeezed(), tq, D), lambda b, qi, ki: (b, qi, 0))

    kernel = functools.partial(_flash_attn_kernel, n_heads=n_heads, d_k=d_k)

    return pl.pallas_call(
        kernel,
        out_shape=jax.ShapeDtypeStruct((B, Sq, D), query.dtype),
        grid_spec=pltpu.PrefetchScalarGridSpec(
            num_scalar_prefetch=0,
            grid=(B, n_q, n_kv),
            in_specs=[q_spec, kv_spec, kv_spec,
                      w_spec, b_spec, w_spec, b_spec,
                      w_spec, b_spec, w_spec, b_spec],
            out_specs=out_spec,
            scratch_shapes=[
                pltpu.VMEM((tq, D), jnp.bfloat16),             # projected (scaled) Q tile
                pltpu.VMEM((n_heads, tq, 1), jnp.float32),     # running max per head
                pltpu.VMEM((n_heads, tq, 1), jnp.float32),     # running denom per head
                pltpu.VMEM((n_heads, tq, d_k), jnp.float32),   # context accumulator
            ],
        ),
        compiler_params=pltpu.CompilerParams(
            dimension_semantics=("parallel", "parallel", "arbitrary"),
            vmem_limit_bytes=48 * 1024 * 1024,   # fits v7x's 64 MiB/TC with headroom
        ),
    )(query, key, value,
      wq_t, bq, wk_t, bk, wv_t, bv, wo_t, bo)


def _init_params(key, d_model):
    """Deterministic init matching the PyTorch module's init scheme."""
    gain = math.sqrt(2.0 / (d_model + d_model))
    w_bound = gain * math.sqrt(6.0 / (d_model + d_model))   # xavier_uniform bound
    b_bound = 0.1 / math.sqrt(d_model)
    keys = jax.random.split(key, 8)
    params = {}
    for i, name in enumerate(["q", "k", "v", "o"]):
        params[f"W_{name}"] = jax.random.uniform(
            keys[2 * i], (d_model, d_model), jnp.float32, -w_bound, w_bound)
        params[f"b_{name}"] = jax.random.uniform(
            keys[2 * i + 1], (d_model,), jnp.float32, -b_bound, b_bound)
    return params


def _reference(query, key, value, params, *, n_heads):
    """Pure-JAX f32 reference mirroring the PyTorch forward (eval mode, no mask)."""
    B, S, D = query.shape
    d_k = D // n_heads
    scale = 1.0 / math.sqrt(d_k)

    def proj(x, W, b):
        return x @ W.T + b

    Q = proj(query, params["W_q"], params["b_q"]).reshape(B, S, n_heads, d_k).transpose(0, 2, 1, 3)
    K = proj(key, params["W_k"], params["b_k"]).reshape(B, S, n_heads, d_k).transpose(0, 2, 1, 3)
    V = proj(value, params["W_v"], params["b_v"]).reshape(B, S, n_heads, d_k).transpose(0, 2, 1, 3)
    scores = jnp.einsum("bhqd,bhkd->bhqk", Q, K) * scale
    attn = jax.nn.softmax(scores, axis=-1)
    ctx = jnp.einsum("bhqk,bhkd->bhqd", attn, V)
    ctx = ctx.transpose(0, 2, 1, 3).reshape(B, S, D)
    return proj(ctx, params["W_o"], params["b_o"])


if __name__ == "__main__":
    B, S, d_model, n_heads = 2, 8, 32, 4

    root = jax.random.PRNGKey(0)
    k_q, k_k, k_v, k_p = jax.random.split(root, 4)
    query = jax.random.normal(k_q, (B, S, d_model), jnp.float32)
    key_t = jax.random.normal(k_k, (B, S, d_model), jnp.float32)
    value = jax.random.normal(k_v, (B, S, d_model), jnp.float32)
    params = _init_params(k_p, d_model)

    out = custom_attention(query, key_t, value, params, n_heads=n_heads)
    out = jax.block_until_ready(out)

    ref = _reference(query, key_t, value, params, n_heads=n_heads)
    assert out.shape == (B, S, d_model)
    # bf16 MXU operands + approx reciprocal => relax tolerance vs the f32 reference.
    assert jnp.allclose(out, ref, atol=2e-2, rtol=2e-2), "mismatch vs JAX reference"

    print("KERNEL_OK")
</pallas_src>

<mosaic_0001>
module attributes {stable_mosaic.version = 11 : i64} {
  func.func @_flash_attn_kernel(%arg0: i32, %arg1: i32, %arg2: i32, %arg3: memref<1x8x32xf32, #tpu.memory_space<vmem>>, %arg4: memref<1x8x32xf32, #tpu.memory_space<vmem>>, %arg5: memref<1x8x32xf32, #tpu.memory_space<vmem>>, %arg6: memref<32x32xbf16, #tpu.memory_space<vmem>>, %arg7: memref<1x32xf32, #tpu.memory_space<vmem>>, %arg8: memref<32x32xbf16, #tpu.memory_space<vmem>>, %arg9: memref<1x32xf32, #tpu.memory_space<vmem>>, %arg10: memref<32x32xbf16, #tpu.memory_space<vmem>>, %arg11: memref<1x32xf32, #tpu.memory_space<vmem>>, %arg12: memref<32x32xbf16, #tpu.memory_space<vmem>>, %arg13: memref<1x32xf32, #tpu.memory_space<vmem>>, %arg14: memref<1x8x32xf32, #tpu.memory_space<vmem>>, %arg15: memref<8x32xbf16, #tpu.memory_space<vmem>>, %arg16: memref<4x8x1xf32, #tpu.memory_space<vmem>>, %arg17: memref<4x8x1xf32, #tpu.memory_space<vmem>>, %arg18: memref<4x8x8xf32, #tpu.memory_space<vmem>>) attributes {dimension_semantics = [#tpu.dimension_semantics<parallel>, #tpu.dimension_semantics<parallel>, #tpu.dimension_semantics<arbitrary>], iteration_bounds = array<i64: 2, 1, 1>, scalar_prefetch = 0 : i64, scratch_operands = 4 : i64, tpu.core_type = #tpu.core_type<tc>, window_params = [{transform_indices = @transform_0, window_bounds = array<i64: 1, 8, 32>}, {transform_indices = @transform_1, window_bounds = array<i64: 1, 8, 32>}, {transform_indices = @transform_2, window_bounds = array<i64: 1, 8, 32>}, {pipeline_mode = #tpu.pipeline_mode<synchronous>, transform_indices = @transform_3, window_bounds = array<i64: 32, 32>}, {pipeline_mode = #tpu.pipeline_mode<synchronous>, transform_indices = @transform_4, window_bounds = array<i64: 1, 32>}, {pipeline_mode = #tpu.pipeline_mode<synchronous>, transform_indices = @transform_5, window_bounds = array<i64: 32, 32>}, {pipeline_mode = #tpu.pipeline_mode<synchronous>, transform_indices = @transform_6, window_bounds = array<i64: 1, 32>}, {pipeline_mode = #tpu.pipeline_mode<synchronous>, transform_indices = @transform_7, window_bounds = array<i64: 32, 32>}, {pipeline_mode = #tpu.pipeline_mode<synchronous>, transform_indices = @transform_8, window_bounds = array<i64: 1, 32>}, {pipeline_mode = #tpu.pipeline_mode<synchronous>, transform_indices = @transform_9, window_bounds = array<i64: 32, 32>}, {pipeline_mode = #tpu.pipeline_mode<synchronous>, transform_indices = @transform_10, window_bounds = array<i64: 1, 32>}, {transform_indices = @transform_11, window_bounds = array<i64: 1, 8, 32>}]} {
    %c0_i32 = arith.constant 0 : i32
    %0 = arith.cmpi eq, %arg2, %c0_i32 : i32
    %1 = arith.extui %0 : i1 to i32
    %c0_i32_0 = arith.constant 0 : i32
    %2 = arith.cmpi ne, %1, %c0_i32_0 : i32
    scf.if %2 {
      %c0_107 = arith.constant 0 : index
      %c0_108 = arith.constant 0 : index
      %c0_109 = arith.constant 0 : index
      %168 = vector.load %arg3[%c0_107, %c0_108, %c0_109] : memref<1x8x32xf32, #tpu.memory_space<vmem>>, vector<1x8x32xf32>
      %169 = vector.shape_cast %168 : vector<1x8x32xf32> to vector<8x32xf32>
      %170 = arith.truncf %169 : vector<8x32xf32> to vector<8x32xbf16>
      %c0_110 = arith.constant 0 : index
      %c0_111 = arith.constant 0 : index
      %171 = vector.load %arg6[%c0_110, %c0_111] : memref<32x32xbf16, #tpu.memory_space<vmem>>, vector<32x32xbf16>
      %cst_112 = arith.constant dense<0.000000e+00> : vector<8x32xf32>
      %172 = tpu.matmul %170, %171, %cst_112 {dimension_numbers = #tpu.dot_dimension_numbers<[1], [0], [0], [1], [0, 0, 1, 1], [], []>} : vector<8x32xbf16>, vector<32x32xbf16>, vector<8x32xf32> -> vector<8x32xf32>
      %c0_113 = arith.constant 0 : index
      %c0_114 = arith.constant 0 : index
      %173 = vector.load %arg7[%c0_113, %c0_114] : memref<1x32xf32, #tpu.memory_space<vmem>>, vector<1x32xf32>
      %174 = vector.broadcast %173 : vector<1x32xf32> to vector<8x32xf32>
      %175 = arith.addf %172, %174 : vector<8x32xf32>
      %176 = arith.truncf %175 : vector<8x32xf32> to vector<8x32xbf16>
      %c0_115 = arith.constant 0 : index
      %c0_116 = arith.constant 0 : index
      %177 = vector.load %arg15[%c0_115, %c0_116] : memref<8x32xbf16, #tpu.memory_space<vmem>>, vector<8x32xbf16>
      tpu.vector_store %arg15[%c0_115, %c0_116], %176 {strides = array<i32>} : memref<8x32xbf16, #tpu.memory_space<vmem>>, vector<8x32xbf16>,
      %cst_117 = arith.constant 0xFF800000 : f32
      %178 = vector.broadcast %cst_117 : f32 to vector<4x8x1xf32>
      %c0_118 = arith.constant 0 : index
      %c0_119 = arith.constant 0 : index
      %c0_120 = arith.constant 0 : index
      %179 = vector.load %arg16[%c0_118, %c0_119, %c0_120] : memref<4x8x1xf32, #tpu.memory_space<vmem>>, vector<4x8x1xf32>
      tpu.vector_store %arg16[%c0_118, %c0_119, %c0_120], %178 {strides = array<i32>} : memref<4x8x1xf32, #tpu.memory_space<vmem>>, vector<4x8x1xf32>,
      %cst_121 = arith.constant 0.000000e+00 : f32
      %180 = vector.broadcast %cst_121 : f32 to vector<4x8x1xf32>
      %c0_122 = arith.constant 0 : index
      %c0_123 = arith.constant 0 : index
      %c0_124 = arith.constant 0 : index
      %181 = vector.load %arg17[%c0_122, %c0_123, %c0_124] : memref<4x8x1xf32, #tpu.memory_space<vmem>>, vector<4x8x1xf32>
      tpu.vector_store %arg17[%c0_122, %c0_123, %c0_124], %180 {strides = array<i32>} : memref<4x8x1xf32, #tpu.memory_space<vmem>>, vector<4x8x1xf32>,
      %cst_125 = arith.constant 0.000000e+00 : f32
      %182 = vector.broadcast %cst_125 : f32 to vector<4x8x8xf32>
      %c0_126 = arith.constant 0 : index
      %c0_127 = arith.constant 0 : index
      %c0_128 = arith.constant 0 : index
      %183 = vector.load %arg18[%c0_126, %c0_127, %c0_128] : memref<4x8x8xf32, #tpu.memory_space<vmem>>, vector<4x8x8xf32>
      tpu.vector_store %arg18[%c0_126, %c0_127, %c0_128], %182 {strides = array<i32>} : memref<4x8x8xf32, #tpu.memory_space<vmem>>, vector<4x8x8xf32>,
    } else {
    }
    %c0 = arith.constant 0 : index
    %c0_1 = arith.constant 0 : index
    %c0_2 = arith.constant 0 : index
    %3 = vector.load %arg4[%c0, %c0_1, %c0_2] : memref<1x8x32xf32, #tpu.memory_space<vmem>>, vector<1x8x32xf32>
    %4 = vector.shape_cast %3 : vector<1x8x32xf32> to vector<8x32xf32>
    %5 = arith.truncf %4 : vector<8x32xf32> to vector<8x32xbf16>
    %c0_3 = arith.constant 0 : index
    %c0_4 = arith.constant 0 : index
    %6 = vector.load %arg8[%c0_3, %c0_4] : memref<32x32xbf16, #tpu.memory_space<vmem>>, vector<32x32xbf16>
    %cst = arith.constant dense<0.000000e+00> : vector<8x32xf32>
    %7 = tpu.matmul %5, %6, %cst {dimension_numbers = #tpu.dot_dimension_numbers<[1], [0], [0], [1], [0, 0, 1, 1], [], []>} : vector<8x32xbf16>, vector<32x32xbf16>, vector<8x32xf32> -> vector<8x32xf32>
    %c0_5 = arith.constant 0 : index
    %c0_6 = arith.constant 0 : index
    %8 = vector.load %arg9[%c0_5, %c0_6] : memref<1x32xf32, #tpu.memory_space<vmem>>, vector<1x32xf32>
    %9 = vector.broadcast %8 : vector<1x32xf32> to vector<8x32xf32>
    %10 = arith.addf %7, %9 : vector<8x32xf32>
    %11 = arith.truncf %10 : vector<8x32xf32> to vector<8x32xbf16>
    %c0_7 = arith.constant 0 : index
    %c0_8 = arith.constant 0 : index
    %c0_9 = arith.constant 0 : index
    %12 = vector.load %arg5[%c0_7, %c0_8, %c0_9] : memref<1x8x32xf32, #tpu.memory_space<vmem>>, vector<1x8x32xf32>
    %13 = vector.shape_cast %12 : vector<1x8x32xf32> to vector<8x32xf32>
    %14 = arith.truncf %13 : vector<8x32xf32> to vector<8x32xbf16>
    %c0_10 = arith.constant 0 : index
    %c0_11 = arith.constant 0 : index
    %15 = vector.load %arg10[%c0_10, %c0_11] : memref<32x32xbf16, #tpu.memory_space<vmem>>, vector<32x32xbf16>
    %cst_12 = arith.constant dense<0.000000e+00> : vector<8x32xf32>
    %16 = tpu.matmul %14, %15, %cst_12 {dimension_numbers = #tpu.dot_dimension_numbers<[1], [0], [0], [1], [0, 0, 1, 1], [], []>} : vector<8x32xbf16>, vector<32x32xbf16>, vector<8x32xf32> -> vector<8x32xf32>
    %c0_13 = arith.constant 0 : index
    %c0_14 = arith.constant 0 : index
    %17 = vector.load %arg11[%c0_13, %c0_14] : memref<1x32xf32, #tpu.memory_space<vmem>>, vector<1x32xf32>
    %18 = vector.broadcast %17 : vector<1x32xf32> to vector<8x32xf32>
    %19 = arith.addf %16, %18 : vector<8x32xf32>
    %20 = arith.truncf %19 : vector<8x32xf32> to vector<8x32xbf16>
    %c0_15 = arith.constant 0 : index
    %c0_16 = arith.constant 0 : index
    %21 = vector.load %arg15[%c0_15, %c0_16] : memref<8x32xbf16, #tpu.memory_space<vmem>>, vector<8x8xbf16>
    %22 = vector.extract_strided_slice %11 {offsets = [0, 0], sizes = [8, 8], strides = [1, 1]} : vector<8x32xbf16> to vector<8x8xbf16>
    %23 = vector.extract_strided_slice %20 {offsets = [0, 0], sizes = [8, 8], strides = [1, 1]} : vector<8x32xbf16> to vector<8x8xbf16>
    %cst_17 = arith.constant dense<0.000000e+00> : vector<8x8xf32>
    %24 = tpu.matmul %21, %22, %cst_17 {dimension_numbers = #tpu.dot_dimension_numbers<[1], [1], [0], [0], [0, 0, 1, 0], [], []>} : vector<8x8xbf16>, vector<8x8xbf16>, vector<8x8xf32> -> vector<8x8xf32>
    %c0_18 = arith.constant 0 : index
    %c0_19 = arith.constant 0 : index
    %c0_20 = arith.constant 0 : index
    %25 = vector.load %arg16[%c0_18, %c0_19, %c0_20] : memref<4x8x1xf32, #tpu.memory_space<vmem>>, vector<1x8x1xf32>
    %26 = vector.shape_cast %25 : vector<1x8x1xf32> to vector<8x1xf32>
    %cst_21 = arith.constant dense<0xFF800000> : vector<8xf32>
    %27 = vector.multi_reduction <maximumf>, %24, %cst_21 [1] : vector<8x8xf32> to vector<8xf32>
    %28 = vector.shape_cast %27 : vector<8xf32> to vector<8x1xf32>
    %29 = arith.maximumf %26, %28 : vector<8x1xf32>
    %30 = arith.subf %26, %29 : vector<8x1xf32>
    %31 = math.exp %30 : vector<8x1xf32>
    %32 = vector.broadcast %29 : vector<8x1xf32> to vector<8x8xf32>
    %33 = arith.subf %24, %32 : vector<8x8xf32>
    %34 = math.exp %33 : vector<8x8xf32>
    %c0_22 = arith.constant 0 : index
    %c0_23 = arith.constant 0 : index
    %c0_24 = arith.constant 0 : index
    %35 = vector.load %arg17[%c0_22, %c0_23, %c0_24] : memref<4x8x1xf32, #tpu.memory_space<vmem>>, vector<1x8x1xf32>
    %36 = vector.shape_cast %35 : vector<1x8x1xf32> to vector<8x1xf32>
    %37 = arith.mulf %31, %36 : vector<8x1xf32>
    %cst_25 = arith.constant dense<0.000000e+00> : vector<8xf32>
    %38 = vector.multi_reduction <add>, %34, %cst_25 [1] : vector<8x8xf32> to vector<8xf32>
    %39 = vector.shape_cast %38 : vector<8xf32> to vector<8x1xf32>
    %40 = arith.addf %37, %39 : vector<8x1xf32>
    %c0_26 = arith.constant 0 : index
    %c0_27 = arith.constant 0 : index
    %c0_28 = arith.constant 0 : index
    %41 = vector.load %arg17[%c0_26, %c0_27, %c0_28] : memref<4x8x1xf32, #tpu.memory_space<vmem>>, vector<1x8x1xf32>
    %42 = vector.shape_cast %41 : vector<1x8x1xf32> to vector<8x1xf32>
    %43 = vector.shape_cast %40 : vector<8x1xf32> to vector<1x8x1xf32>
    tpu.vector_store %arg17[%c0_26, %c0_27, %c0_28], %43 {strides = array<i32>} : memref<4x8x1xf32, #tpu.memory_space<vmem>>, vector<1x8x1xf32>,
    %c0_29 = arith.constant 0 : index
    %c0_30 = arith.constant 0 : index
    %c0_31 = arith.constant 0 : index
    %44 = vector.load %arg18[%c0_29, %c0_30, %c0_31] : memref<4x8x8xf32, #tpu.memory_space<vmem>>, vector<1x8x8xf32>
    %45 = vector.shape_cast %44 : vector<1x8x8xf32> to vector<8x8xf32>
    %46 = vector.broadcast %31 : vector<8x1xf32> to vector<8x8xf32>
    %47 = arith.mulf %46, %45 : vector<8x8xf32>
    %48 = arith.truncf %34 : vector<8x8xf32> to vector<8x8xbf16>
    %cst_32 = arith.constant dense<0.000000e+00> : vector<8x8xf32>
    %49 = tpu.matmul %48, %23, %cst_32 {dimension_numbers = #tpu.dot_dimension_numbers<[1], [0], [0], [1], [0, 0, 1, 1], [], []>} : vector<8x8xbf16>, vector<8x8xbf16>, vector<8x8xf32> -> vector<8x8xf32>
    %50 = arith.addf %47, %49 : vector<8x8xf32>
    %c0_33 = arith.constant 0 : index
    %c0_34 = arith.constant 0 : index
    %c0_35 = arith.constant 0 : index
    %51 = vector.load %arg18[%c0_33, %c0_34, %c0_35] : memref<4x8x8xf32, #tpu.memory_space<vmem>>, vector<1x8x8xf32>
    %52 = vector.shape_cast %51 : vector<1x8x8xf32> to vector<8x8xf32>
    %53 = vector.shape_cast %50 : vector<8x8xf32> to vector<1x8x8xf32>
    tpu.vector_store %arg18[%c0_33, %c0_34, %c0_35], %53 {strides = array<i32>} : memref<4x8x8xf32, #tpu.memory_space<vmem>>, vector<1x8x8xf32>,
    %c0_36 = arith.constant 0 : index
    %c0_37 = arith.constant 0 : index
    %c0_38 = arith.constant 0 : index
    %54 = vector.load %arg16[%c0_36, %c0_37, %c0_38] : memref<4x8x1xf32, #tpu.memory_space<vmem>>, vector<1x8x1xf32>
    %55 = vector.shape_cast %54 : vector<1x8x1xf32> to vector<8x1xf32>
    %56 = vector.shape_cast %29 : vector<8x1xf32> to vector<1x8x1xf32>
    tpu.vector_store %arg16[%c0_36, %c0_37, %c0_38], %56 {strides = array<i32>} : memref<4x8x1xf32, #tpu.memory_space<vmem>>, vector<1x8x1xf32>,
    %c0_39 = arith.constant 0 : index
    %c8 = arith.constant 8 : index
    %57 = vector.load %arg15[%c0_39, %c8] : memref<8x32xbf16, #tpu.memory_space<vmem>>, vector<8x8xbf16>
    %58 = vector.extract_strided_slice %11 {offsets = [0, 8], sizes = [8, 8], strides = [1, 1]} : vector<8x32xbf16> to vector<8x8xbf16>
    %59 = vector.extract_strided_slice %20 {offsets = [0, 8], sizes = [8, 8], strides = [1, 1]} : vector<8x32xbf16> to vector<8x8xbf16>
    %cst_40 = arith.constant dense<0.000000e+00> : vector<8x8xf32>
    %60 = tpu.matmul %57, %58, %cst_40 {dimension_numbers = #tpu.dot_dimension_numbers<[1], [1], [0], [0], [0, 0, 1, 0], [], []>} : vector<8x8xbf16>, vector<8x8xbf16>, vector<8x8xf32> -> vector<8x8xf32>
    %c1 = arith.constant 1 : index
    %c0_41 = arith.constant 0 : index
    %c0_42 = arith.constant 0 : index
    %61 = vector.load %arg16[%c1, %c0_41, %c0_42] : memref<4x8x1xf32, #tpu.memory_space<vmem>>, vector<1x8x1xf32>
    %62 = vector.shape_cast %61 : vector<1x8x1xf32> to vector<8x1xf32>
    %cst_43 = arith.constant dense<0xFF800000> : vector<8xf32>
    %63 = vector.multi_reduction <maximumf>, %60, %cst_43 [1] : vector<8x8xf32> to vector<8xf32>
    %64 = vector.shape_cast %63 : vector<8xf32> to vector<8x1xf32>
    %65 = arith.maximumf %62, %64 : vector<8x1xf32>
    %66 = arith.subf %62, %65 : vector<8x1xf32>
    %67 = math.exp %66 : vector<8x1xf32>
    %68 = vector.broadcast %65 : vector<8x1xf32> to vector<8x8xf32>
    %69 = arith.subf %60, %68 : vector<8x8xf32>
    %70 = math.exp %69 : vector<8x8xf32>
    %c1_44 = arith.constant 1 : index
    %c0_45 = arith.constant 0 : index
    %c0_46 = arith.constant 0 : index
    %71 = vector.load %arg17[%c1_44, %c0_45, %c0_46] : memref<4x8x1xf32, #tpu.memory_space<vmem>>, vector<1x8x1xf32>
    %72 = vector.shape_cast %71 : vector<1x8x1xf32> to vector<8x1xf32>
    %73 = arith.mulf %67, %72 : vector<8x1xf32>
    %cst_47 = arith.constant dense<0.000000e+00> : vector<8xf32>
    %74 = vector.multi_reduction <add>, %70, %cst_47 [1] : vector<8x8xf32> to vector<8xf32>
    %75 = vector.shape_cast %74 : vector<8xf32> to vector<8x1xf32>
    %76 = arith.addf %73, %75 : vector<8x1xf32>
    %c1_48 = arith.constant 1 : index
    %c0_49 = arith.constant 0 : index
    %c0_50 = arith.constant 0 : index
    %77 = vector.load %arg17[%c1_48, %c0_49, %c0_50] : memref<4x8x1xf32, #tpu.memory_space<vmem>>, vector<1x8x1xf32>
    %78 = vector.shape_cast %77 : vector<1x8x1xf32> to vector<8x1xf32>
    %79 = vector.shape_cast %76 : vector<8x1xf32> to vector<1x8x1xf32>
    tpu.vector_store %arg17[%c1_48, %c0_49, %c0_50], %79 {strides = array<i32>} : memref<4x8x1xf32, #tpu.memory_space<vmem>>, vector<1x8x1xf32>,
    %c1_51 = arith.constant 1 : index
    %c0_52 = arith.constant 0 : index
    %c0_53 = arith.constant 0 : index
    %80 = vector.load %arg18[%c1_51, %c0_52, %c0_53] : memref<4x8x8xf32, #tpu.memory_space<vmem>>, vector<1x8x8xf32>
    %81 = vector.shape_cast %80 : vector<1x8x8xf32> to vector<8x8xf32>
    %82 = vector.broadcast %67 : vector<8x1xf32> to vector<8x8xf32>
    %83 = arith.mulf %82, %81 : vector<8x8xf32>
    %84 = arith.truncf %70 : vector<8x8xf32> to vector<8x8xbf16>
    %cst_54 = arith.constant dense<0.000000e+00> : vector<8x8xf32>
    %85 = tpu.matmul %84, %59, %cst_54 {dimension_numbers = #tpu.dot_dimension_numbers<[1], [0], [0], [1], [0, 0, 1, 1], [], []>} : vector<8x8xbf16>, vector<8x8xbf16>, vector<8x8xf32> -> vector<8x8xf32>
    %86 = arith.addf %83, %85 : vector<8x8xf32>
    %c1_55 = arith.constant 1 : index
    %c0_56 = arith.constant 0 : index
    %c0_57 = arith.constant 0 : index
    %87 = vector.load %arg18[%c1_55, %c0_56, %c0_57] : memref<4x8x8xf32, #tpu.memory_space<vmem>>, vector<1x8x8xf32>
    %88 = vector.shape_cast %87 : vector<1x8x8xf32> to vector<8x8xf32>
    %89 = vector.shape_cast %86 : vector<8x8xf32> to vector<1x8x8xf32>
    tpu.vector_store %arg18[%c1_55, %c0_56, %c0_57], %89 {strides = array<i32>} : memref<4x8x8xf32, #tpu.memory_space<vmem>>, vector<1x8x8xf32>,
    %c1_58 = arith.constant 1 : index
    %c0_59 = arith.constant 0 : index
    %c0_60 = arith.constant 0 : index
    %90 = vector.load %arg16[%c1_58, %c0_59, %c0_60] : memref<4x8x1xf32, #tpu.memory_space<vmem>>, vector<1x8x1xf32>
    %91 = vector.shape_cast %90 : vector<1x8x1xf32> to vector<8x1xf32>
    %92 = vector.shape_cast %65 : vector<8x1xf32> to vector<1x8x1xf32>
    tpu.vector_store %arg16[%c1_58, %c0_59, %c0_60], %92 {strides = array<i32>} : memref<4x8x1xf32, #tpu.memory_space<vmem>>, vector<1x8x1xf32>,
    %c0_61 = arith.constant 0 : index
    %c16 = arith.constant 16 : index
    %93 = vector.load %arg15[%c0_61, %c16] : memref<8x32xbf16, #tpu.memory_space<vmem>>, vector<8x8xbf16>
    %94 = vector.extract_strided_slice %11 {offsets = [0, 16], sizes = [8, 8], strides = [1, 1]} : vector<8x32xbf16> to vector<8x8xbf16>
    %95 = vector.extract_strided_slice %20 {offsets = [0, 16], sizes = [8, 8], strides = [1, 1]} : vector<8x32xbf16> to vector<8x8xbf16>
    %cst_62 = arith.constant dense<0.000000e+00> : vector<8x8xf32>
    %96 = tpu.matmul %93, %94, %cst_62 {dimension_numbers = #tpu.dot_dimension_numbers<[1], [1], [0], [0], [0, 0, 1, 0], [], []>} : vector<8x8xbf16>, vector<8x8xbf16>, vector<8x8xf32> -> vector<8x8xf32>
    %c2 = arith.constant 2 : index
    %c0_63 = arith.constant 0 : index
    %c0_64 = arith.constant 0 : index
    %97 = vector.load %arg16[%c2, %c0_63, %c0_64] : memref<4x8x1xf32, #tpu.memory_space<vmem>>, vector<1x8x1xf32>
    %98 = vector.shape_cast %97 : vector<1x8x1xf32> to vector<8x1xf32>
    %cst_65 = arith.constant dense<0xFF800000> : vector<8xf32>
    %99 = vector.multi_reduction <maximumf>, %96, %cst_65 [1] : vector<8x8xf32> to vector<8xf32>
    %100 = vector.shape_cast %99 : vector<8xf32> to vector<8x1xf32>
    %101 = arith.maximumf %98, %100 : vector<8x1xf32>
    %102 = arith.subf %98, %101 : vector<8x1xf32>
    %103 = math.exp %102 : vector<8x1xf32>
    %104 = vector.broadcast %101 : vector<8x1xf32> to vector<8x8xf32>
    %105 = arith.subf %96, %104 : vector<8x8xf32>
    %106 = math.exp %105 : vector<8x8xf32>
    %c2_66 = arith.constant 2 : index
    %c0_67 = arith.constant 0 : index
    %c0_68 = arith.constant 0 : index
    %107 = vector.load %arg17[%c2_66, %c0_67, %c0_68] : memref<4x8x1xf32, #tpu.memory_space<vmem>>, vector<1x8x1xf32>
    %108 = vector.shape_cast %107 : vector<1x8x1xf32> to vector<8x1xf32>
    %109 = arith.mulf %103, %108 : vector<8x1xf32>
    %cst_69 = arith.constant dense<0.000000e+00> : vector<8xf32>
    %110 = vector.multi_reduction <add>, %106, %cst_69 [1] : vector<8x8xf32> to vector<8xf32>
    %111 = vector.shape_cast %110 : vector<8xf32> to vector<8x1xf32>
    %112 = arith.addf %109, %111 : vector<8x1xf32>
    %c2_70 = arith.constant 2 : index
    %c0_71 = arith.constant 0 : index
    %c0_72 = arith.constant 0 : index
    %113 = vector.load %arg17[%c2_70, %c0_71, %c0_72] : memref<4x8x1xf32, #tpu.memory_space<vmem>>, vector<1x8x1xf32>
    %114 = vector.shape_cast %113 : vector<1x8x1xf32> to vector<8x1xf32>
    %115 = vector.shape_cast %112 : vector<8x1xf32> to vector<1x8x1xf32>
    tpu.vector_store %arg17[%c2_70, %c0_71, %c0_72], %115 {strides = array<i32>} : memref<4x8x1xf32, #tpu.memory_space<vmem>>, vector<1x8x1xf32>,
    %c2_73 = arith.constant 2 : index
    %c0_74 = arith.constant 0 : index
    %c0_75 = arith.constant 0 : index
    %116 = vector.load %arg18[%c2_73, %c0_74, %c0_75] : memref<4x8x8xf32, #tpu.memory_space<vmem>>, vector<1x8x8xf32>
    %117 = vector.shape_cast %116 : vector<1x8x8xf32> to vector<8x8xf32>
    %118 = vector.broadcast %103 : vector<8x1xf32> to vector<8x8xf32>
    %119 = arith.mulf %118, %117 : vector<8x8xf32>
    %120 = arith.truncf %106 : vector<8x8xf32> to vector<8x8xbf16>
    %cst_76 = arith.constant dense<0.000000e+00> : vector<8x8xf32>
    %121 = tpu.matmul %120, %95, %cst_76 {dimension_numbers = #tpu.dot_dimension_numbers<[1], [0], [0], [1], [0, 0, 1, 1], [], []>} : vector<8x8xbf16>, vector<8x8xbf16>, vector<8x8xf32> -> vector<8x8xf32>
    %122 = arith.addf %119, %121 : vector<8x8xf32>
    %c2_77 = arith.constant 2 : index
    %c0_78 = arith.constant 0 : index
    %c0_79 = arith.constant 0 : index
    %123 = vector.load %arg18[%c2_77, %c0_78, %c0_79] : memref<4x8x8xf32, #tpu.memory_space<vmem>>, vector<1x8x8xf32>
    %124 = vector.shape_cast %123 : vector<1x8x8xf32> to vector<8x8xf32>
    %125 = vector.shape_cast %122 : vector<8x8xf32> to vector<1x8x8xf32>
    tpu.vector_store %arg18[%c2_77, %c0_78, %c0_79], %125 {strides = array<i32>} : memref<4x8x8xf32, #tpu.memory_space<vmem>>, vector<1x8x8xf32>,
    %c2_80 = arith.constant 2 : index
    %c0_81 = arith.constant 0 : index
    %c0_82 = arith.constant 0 : index
    %126 = vector.load %arg16[%c2_80, %c0_81, %c0_82] : memref<4x8x1xf32, #tpu.memory_space<vmem>>, vector<1x8x1xf32>
    %127 = vector.shape_cast %126 : vector<1x8x1xf32> to vector<8x1xf32>
    %128 = vector.shape_cast %101 : vector<8x1xf32> to vector<1x8x1xf32>
    tpu.vector_store %arg16[%c2_80, %c0_81, %c0_82], %128 {strides = array<i32>} : memref<4x8x1xf32, #tpu.memory_space<vmem>>, vector<1x8x1xf32>,
    %c0_83 = arith.constant 0 : index
    %c24 = arith.constant 24 : index
    %129 = vector.load %arg15[%c0_83, %c24] : memref<8x32xbf16, #tpu.memory_space<vmem>>, vector<8x8xbf16>
    %130 = vector.extract_strided_slice %11 {offsets = [0, 24], sizes = [8, 8], strides = [1, 1]} : vector<8x32xbf16> to vector<8x8xbf16>
    %131 = vector.extract_strided_slice %20 {offsets = [0, 24], sizes = [8, 8], strides = [1, 1]} : vector<8x32xbf16> to vector<8x8xbf16>
    %cst_84 = arith.constant dense<0.000000e+00> : vector<8x8xf32>
    %132 = tpu.matmul %129, %130, %cst_84 {dimension_numbers = #tpu.dot_dimension_numbers<[1], [1], [0], [0], [0, 0, 1, 0], [], []>} : vector<8x8xbf16>, vector<8x8xbf16>, vector<8x8xf32> -> vector<8x8xf32>
    %c3 = arith.constant 3 : index
    %c0_85 = arith.constant 0 : index
    %c0_86 = arith.constant 0 : index
    %133 = vector.load %arg16[%c3, %c0_85, %c0_86] : memref<4x8x1xf32, #tpu.memory_space<vmem>>, vector<1x8x1xf32>
    %134 = vector.shape_cast %133 : vector<1x8x1xf32> to vector<8x1xf32>
    %cst_87 = arith.constant dense<0xFF800000> : vector<8xf32>
    %135 = vector.multi_reduction <maximumf>, %132, %cst_87 [1] : vector<8x8xf32> to vector<8xf32>
    %136 = vector.shape_cast %135 : vector<8xf32> to vector<8x1xf32>
    %137 = arith.maximumf %134, %136 : vector<8x1xf32>
    %138 = arith.subf %134, %137 : vector<8x1xf32>
    %139 = math.exp %138 : vector<8x1xf32>
    %140 = vector.broadcast %137 : vector<8x1xf32> to vector<8x8xf32>
    %141 = arith.subf %132, %140 : vector<8x8xf32>
    %142 = math.exp %141 : vector<8x8xf32>
    %c3_88 = arith.constant 3 : index
    %c0_89 = arith.constant 0 : index
    %c0_90 = arith.constant 0 : index
    %143 = vector.load %arg17[%c3_88, %c0_89, %c0_90] : memref<4x8x1xf32, #tpu.memory_space<vmem>>, vector<1x8x1xf32>
    %144 = vector.shape_cast %143 : vector<1x8x1xf32> to vector<8x1xf32>
    %145 = arith.mulf %139, %144 : vector<8x1xf32>
    %cst_91 = arith.constant dense<0.000000e+00> : vector<8xf32>
    %146 = vector.multi_reduction <add>, %142, %cst_91 [1] : vector<8x8xf32> to vector<8xf32>
    %147 = vector.shape_cast %146 : vector<8xf32> to vector<8x1xf32>
    %148 = arith.addf %145, %147 : vector<8x1xf32>
    %c3_92 = arith.constant 3 : index
    %c0_93 = arith.constant 0 : index
    %c0_94 = arith.constant 0 : index
    %149 = vector.load %arg17[%c3_92, %c0_93, %c0_94] : memref<4x8x1xf32, #tpu.memory_space<vmem>>, vector<1x8x1xf32>
    %150 = vector.shape_cast %149 : vector<1x8x1xf32> to vector<8x1xf32>
    %151 = vector.shape_cast %148 : vector<8x1xf32> to vector<1x8x1xf32>
    tpu.vector_store %arg17[%c3_92, %c0_93, %c0_94], %151 {strides = array<i32>} : memref<4x8x1xf32, #tpu.memory_space<vmem>>, vector<1x8x1xf32>,
    %c3_95 = arith.constant 3 : index
    %c0_96 = arith.constant 0 : index
    %c0_97 = arith.constant 0 : index
    %152 = vector.load %arg18[%c3_95, %c0_96, %c0_97] : memref<4x8x8xf32, #tpu.memory_space<vmem>>, vector<1x8x8xf32>
    %153 = vector.shape_cast %152 : vector<1x8x8xf32> to vector<8x8xf32>
    %154 = vector.broadcast %139 : vector<8x1xf32> to vector<8x8xf32>
    %155 = arith.mulf %154, %153 : vector<8x8xf32>
    %156 = arith.truncf %142 : vector<8x8xf32> to vector<8x8xbf16>
    %cst_98 = arith.constant dense<0.000000e+00> : vector<8x8xf32>
    %157 = tpu.matmul %156, %131, %cst_98 {dimension_numbers = #tpu.dot_dimension_numbers<[1], [0], [0], [1], [0, 0, 1, 1], [], []>} : vector<8x8xbf16>, vector<8x8xbf16>, vector<8x8xf32> -> vector<8x8xf32>
    %158 = arith.addf %155, %157 : vector<8x8xf32>
    %c3_99 = arith.constant 3 : index
    %c0_100 = arith.constant 0 : index
    %c0_101 = arith.constant 0 : index
    %159 = vector.load %arg18[%c3_99, %c0_100, %c0_101] : memref<4x8x8xf32, #tpu.memory_space<vmem>>, vector<1x8x8xf32>
    %160 = vector.shape_cast %159 : vector<1x8x8xf32> to vector<8x8xf32>
    %161 = vector.shape_cast %158 : vector<8x8xf32> to vector<1x8x8xf32>
    tpu.vector_store %arg18[%c3_99, %c0_100, %c0_101], %161 {strides = array<i32>} : memref<4x8x8xf32, #tpu.memory_space<vmem>>, vector<1x8x8xf32>,
    %c3_102 = arith.constant 3 : index
    %c0_103 = arith.constant 0 : index
    %c0_104 = arith.constant 0 : index
    %162 = vector.load %arg16[%c3_102, %c0_103, %c0_104] : memref<4x8x1xf32, #tpu.memory_space<vmem>>, vector<1x8x1xf32>
    %163 = vector.shape_cast %162 : vector<1x8x1xf32> to vector<8x1xf32>
    %164 = vector.shape_cast %137 : vector<8x1xf32> to vector<1x8x1xf32>
    tpu.vector_store %arg16[%c3_102, %c0_103, %c0_104], %164 {strides = array<i32>} : memref<4x8x1xf32, #tpu.memory_space<vmem>>, vector<1x8x1xf32>,
    %c0_i32_105 = arith.constant 0 : i32
    %165 = arith.cmpi eq, %arg2, %c0_i32_105 : i32
    %166 = arith.extui %165 : i1 to i32
    %c0_i32_106 = arith.constant 0 : i32
    %167 = arith.cmpi ne, %166, %c0_i32_106 : i32
    scf.if %167 {
      %cst_107 = arith.constant 0.000000e+00 : f32
      %168 = vector.broadcast %cst_107 : f32 to vector<8x32xf32>
      %c0_108 = arith.constant 0 : index
      %c0_109 = arith.constant 0 : index
      %c0_110 = arith.constant 0 : index
      %169 = vector.load %arg17[%c0_108, %c0_109, %c0_110] : memref<4x8x1xf32, #tpu.memory_space<vmem>>, vector<1x8x1xf32>
      %170 = vector.shape_cast %169 : vector<1x8x1xf32> to vector<8x1xf32>
      %171 = tpu.reciprocal %170 {approx = true} : vector<8x1xf32> -> vector<8x1xf32>
      %c0_111 = arith.constant 0 : index
      %c0_112 = arith.constant 0 : index
      %c0_113 = arith.constant 0 : index
      %172 = vector.load %arg18[%c0_111, %c0_112, %c0_113] : memref<4x8x8xf32, #tpu.memory_space<vmem>>, vector<1x8x8xf32>
      %173 = vector.shape_cast %172 : vector<1x8x8xf32> to vector<8x8xf32>
      %174 = vector.broadcast %171 : vector<8x1xf32> to vector<8x8xf32>
      %175 = arith.mulf %173, %174 : vector<8x8xf32>
      %176 = arith.truncf %175 : vector<8x8xf32> to vector<8x8xbf16>
      %c0_114 = arith.constant 0 : index
      %c0_115 = arith.constant 0 : index
      %177 = vector.load %arg12[%c0_114, %c0_115] : memref<32x32xbf16, #tpu.memory_space<vmem>>, vector<8x32xbf16>
      %cst_116 = arith.constant dense<0.000000e+00> : vector<8x32xf32>
      %178 = tpu.matmul %176, %177, %cst_116 {dimension_numbers = #tpu.dot_dimension_numbers<[1], [0], [0], [1], [0, 0, 1, 1], [], []>} : vector<8x8xbf16>, vector<8x32xbf16>, vector<8x32xf32> -> vector<8x32xf32>
      %179 = arith.addf %168, %178 : vector<8x32xf32>
      %c1_117 = arith.constant 1 : index
      %c0_118 = arith.constant 0 : index
      %c0_119 = arith.constant 0 : index
      %180 = vector.load %arg17[%c1_117, %c0_118, %c0_119] : memref<4x8x1xf32, #tpu.memory_space<vmem>>, vector<1x8x1xf32>
      %181 = vector.shape_cast %180 : vector<1x8x1xf32> to vector<8x1xf32>
      %182 = tpu.reciprocal %181 {approx = true} : vector<8x1xf32> -> vector<8x1xf32>
      %c1_120 = arith.constant 1 : index
      %c0_121 = arith.constant 0 : index
      %c0_122 = arith.constant 0 : index
      %183 = vector.load %arg18[%c1_120, %c0_121, %c0_122] : memref<4x8x8xf32, #tpu.memory_space<vmem>>, vector<1x8x8xf32>
      %184 = vector.shape_cast %183 : vector<1x8x8xf32> to vector<8x8xf32>
      %185 = vector.broadcast %182 : vector<8x1xf32> to vector<8x8xf32>
      %186 = arith.mulf %184, %185 : vector<8x8xf32>
      %187 = arith.truncf %186 : vector<8x8xf32> to vector<8x8xbf16>
      %c8_123 = arith.constant 8 : index
      %c0_124 = arith.constant 0 : index
      %188 = vector.load %arg12[%c8_123, %c0_124] : memref<32x32xbf16, #tpu.memory_space<vmem>>, vector<8x32xbf16>
      %cst_125 = arith.constant dense<0.000000e+00> : vector<8x32xf32>
      %189 = tpu.matmul %187, %188, %cst_125 {dimension_numbers = #tpu.dot_dimension_numbers<[1], [0], [0], [1], [0, 0, 1, 1], [], []>} : vector<8x8xbf16>, vector<8x32xbf16>, vector<8x32xf32> -> vector<8x32xf32>
      %190 = arith.addf %179, %189 : vector<8x32xf32>
      %c2_126 = arith.constant 2 : index
      %c0_127 = arith.constant 0 : index
      %c0_128 = arith.constant 0 : index
      %191 = vector.load %arg17[%c2_126, %c0_127, %c0_128] : memref<4x8x1xf32, #tpu.memory_space<vmem>>, vector<1x8x1xf32>
      %192 = vector.shape_cast %191 : vector<1x8x1xf32> to vector<8x1xf32>
      %193 = tpu.reciprocal %192 {approx = true} : vector<8x1xf32> -> vector<8x1xf32>
      %c2_129 = arith.constant 2 : index
      %c0_130 = arith.constant 0 : index
      %c0_131 = arith.constant 0 : index
      %194 = vector.load %arg18[%c2_129, %c0_130, %c0_131] : memref<4x8x8xf32, #tpu.memory_space<vmem>>, vector<1x8x8xf32>
      %195 = vector.shape_cast %194 : vector<1x8x8xf32> to vector<8x8xf32>
      %196 = vector.broadcast %193 : vector<8x1xf32> to vector<8x8xf32>
      %197 = arith.mulf %195, %196 : vector<8x8xf32>
      %198 = arith.truncf %197 : vector<8x8xf32> to vector<8x8xbf16>
      %c16_132 = arith.constant 16 : index
      %c0_133 = arith.constant 0 : index
      %199 = vector.load %arg12[%c16_132, %c0_133] : memref<32x32xbf16, #tpu.memory_space<vmem>>, vector<8x32xbf16>
      %cst_134 = arith.constant dense<0.000000e+00> : vector<8x32xf32>
      %200 = tpu.matmul %198, %199, %cst_134 {dimension_numbers = #tpu.dot_dimension_numbers<[1], [0], [0], [1], [0, 0, 1, 1], [], []>} : vector<8x8xbf16>, vector<8x32xbf16>, vector<8x32xf32> -> vector<8x32xf32>
      %201 = arith.addf %190, %200 : vector<8x32xf32>
      %c3_135 = arith.constant 3 : index
      %c0_136 = arith.constant 0 : index
      %c0_137 = arith.constant 0 : index
      %202 = vector.load %arg17[%c3_135, %c0_136, %c0_137] : memref<4x8x1xf32, #tpu.memory_space<vmem>>, vector<1x8x1xf32>
      %203 = vector.shape_cast %202 : vector<1x8x1xf32> to vector<8x1xf32>
      %204 = tpu.reciprocal %203 {approx = true} : vector<8x1xf32> -> vector<8x1xf32>
      %c3_138 = arith.constant 3 : index
      %c0_139 = arith.constant 0 : index
      %c0_140 = arith.constant 0 : index
      %205 = vector.load %arg18[%c3_138, %c0_139, %c0_140] : memref<4x8x8xf32, #tpu.memory_space<vmem>>, vector<1x8x8xf32>
      %206 = vector.shape_cast %205 : vector<1x8x8xf32> to vector<8x8xf32>
      %207 = vector.broadcast %204 : vector<8x1xf32> to vector<8x8xf32>
      %208 = arith.mulf %206, %207 : vector<8x8xf32>
      %209 = arith.truncf %208 : vector<8x8xf32> to vector<8x8xbf16>
      %c24_141 = arith.constant 24 : index
      %c0_142 = arith.constant 0 : index
      %210 = vector.load %arg12[%c24_141, %c0_142] : memref<32x32xbf16, #tpu.memory_space<vmem>>, vector<8x32xbf16>
      %cst_143 = arith.constant dense<0.000000e+00> : vector<8x32xf32>
      %211 = tpu.matmul %209, %210, %cst_143 {dimension_numbers = #tpu.dot_dimension_numbers<[1], [0], [0], [1], [0, 0, 1, 1], [], []>} : vector<8x8xbf16>, vector<8x32xbf16>, vector<8x32xf32> -> vector<8x32xf32>
      %212 = arith.addf %201, %211 : vector<8x32xf32>
      %c0_144 = arith.constant 0 : index
      %c0_145 = arith.constant 0 : index
      %213 = vector.load %arg13[%c0_144, %c0_145] : memref<1x32xf32, #tpu.memory_space<vmem>>, vector<1x32xf32>
      %214 = vector.broadcast %213 : vector<1x32xf32> to vector<8x32xf32>
      %215 = arith.addf %212, %214 : vector<8x32xf32>
      %c0_146 = arith.constant 0 : index
      %c0_147 = arith.constant 0 : index
      %c0_148 = arith.constant 0 : index
      %216 = vector.load %arg14[%c0_146, %c0_147, %c0_148] : memref<1x8x32xf32, #tpu.memory_space<vmem>>, vector<1x8x32xf32>
      %217 = vector.shape_cast %216 : vector<1x8x32xf32> to vector<8x32xf32>
      %218 = vector.shape_cast %215 : vector<8x32xf32> to vector<1x8x32xf32>
      tpu.vector_store %arg14[%c0_146, %c0_147, %c0_148], %218 {strides = array<i32>} : memref<1x8x32xf32, #tpu.memory_space<vmem>>, vector<1x8x32xf32>,
    } else {
    }
    return
  }
  func.func @transform_0(%arg0: i32, %arg1: i32, %arg2: i32) -> (i32, i32, i32) {
    %c0_i32 = arith.constant 0 : i32
    %c0_i32_0 = arith.constant 0 : i32
    return %arg0, %arg1, %c0_i32 : i32, i32, i32
  }
  func.func @transform_1(%arg0: i32, %arg1: i32, %arg2: i32) -> (i32, i32, i32) {
    %c0_i32 = arith.constant 0 : i32
    %c0_i32_0 = arith.constant 0 : i32
    return %arg0, %arg2, %c0_i32 : i32, i32, i32
  }
  func.func @transform_2(%arg0: i32, %arg1: i32, %arg2: i32) -> (i32, i32, i32) {
    %c0_i32 = arith.constant 0 : i32
    %c0_i32_0 = arith.constant 0 : i32
    return %arg0, %arg2, %c0_i32 : i32, i32, i32
  }
  func.func @transform_3(%arg0: i32, %arg1: i32, %arg2: i32) -> (i32, i32) {
    %c0_i32 = arith.constant 0 : i32
    %c0_i32_0 = arith.constant 0 : i32
    %c0_i32_1 = arith.constant 0 : i32
    return %c0_i32, %c0_i32_0 : i32, i32
  }
  func.func @transform_4(%arg0: i32, %arg1: i32, %arg2: i32) -> (i32, i32) {
    %c0_i32 = arith.constant 0 : i32
    %c0_i32_0 = arith.constant 0 : i32
    %c0_i32_1 = arith.constant 0 : i32
    return %c0_i32, %c0_i32_0 : i32, i32
  }
  func.func @transform_5(%arg0: i32, %arg1: i32, %arg2: i32) -> (i32, i32) {
    %c0_i32 = arith.constant 0 : i32
    %c0_i32_0 = arith.constant 0 : i32
    %c0_i32_1 = arith.constant 0 : i32
    return %c0_i32, %c0_i32_0 : i32, i32
  }
  func.func @transform_6(%arg0: i32, %arg1: i32, %arg2: i32) -> (i32, i32) {
    %c0_i32 = arith.constant 0 : i32
    %c0_i32_0 = arith.constant 0 : i32
    %c0_i32_1 = arith.constant 0 : i32
    return %c0_i32, %c0_i32_0 : i32, i32
  }
  func.func @transform_7(%arg0: i32, %arg1: i32, %arg2: i32) -> (i32, i32) {
    %c0_i32 = arith.constant 0 : i32
    %c0_i32_0 = arith.constant 0 : i32
    %c0_i32_1 = arith.constant 0 : i32
    return %c0_i32, %c0_i32_0 : i32, i32
  }
  func.func @transform_8(%arg0: i32, %arg1: i32, %arg2: i32) -> (i32, i32) {
    %c0_i32 = arith.constant 0 : i32
    %c0_i32_0 = arith.constant 0 : i32
    %c0_i32_1 = arith.constant 0 : i32
    return %c0_i32, %c0_i32_0 : i32, i32
  }
  func.func @transform_9(%arg0: i32, %arg1: i32, %arg2: i32) -> (i32, i32) {
    %c0_i32 = arith.constant 0 : i32
    %c0_i32_0 = arith.constant 0 : i32
    %c0_i32_1 = arith.constant 0 : i32
    return %c0_i32, %c0_i32_0 : i32, i32
  }
  func.func @transform_10(%arg0: i32, %arg1: i32, %arg2: i32) -> (i32, i32) {
    %c0_i32 = arith.constant 0 : i32
    %c0_i32_0 = arith.constant 0 : i32
    %c0_i32_1 = arith.constant 0 : i32
    return %c0_i32, %c0_i32_0 : i32, i32
  }
  func.func @transform_11(%arg0: i32, %arg1: i32, %arg2: i32) -> (i32, i32, i32) {
    %c0_i32 = arith.constant 0 : i32
    %c0_i32_0 = arith.constant 0 : i32
    return %arg0, %arg1, %c0_i32 : i32, i32, i32
  }
}

</mosaic_0001>

<llo_original>
// kernel: tpu_custom_call.1
$region0: #{tpu_custom_call.1}
  #allocation0 [shape = 'u32[]', space=smem, size = 0x4, offset = 0x4, fixed_abs, tag = 'smem constant byte address 0x4 - core index']
  #allocation1 [shape = 'u32[144,128]{1,0:T(1,128)}', space=vmem, size = 0x12000, scoped, tag = 'internal scratch']
  #allocation2 [shape = 'bf16[8,32]{1,0:T(8,128)(2,1)}', space=vmem, size = 0x800, scoped, tag = 'scratch operand']
  #allocation3 [shape = 'f32[4,8,1]{2,1,0:T(8,128)}', space=vmem, size = 0x4000, scoped, tag = 'scratch operand']
  #allocation4 [shape = 'f32[4,8,1]{2,1,0:T(8,128)}', space=vmem, size = 0x4000, scoped, tag = 'scratch operand']
  #allocation5 [shape = 'f32[4,8,8]{2,1,0:T(8,128)}', space=vmem, size = 0x4000, scoped, tag = 'scratch operand']
  %s0 = inlined_call_operand.hbm [shape: f32[2,8,32], index: 0, kind: input, shape index: {}]
  %s1 = inlined_call_operand.hbm [shape: f32[2,8,32], index: 1, kind: input, shape index: {}]
  %s2 = inlined_call_operand.hbm [shape: f32[2,8,32], index: 2, kind: input, shape index: {}]
  %s3 = inlined_call_operand.hbm [shape: bf16[32,32], index: 3, kind: input, shape index: {}]
  %s4 = inlined_call_operand.vmem [shape: f32[1,32], index: 4, kind: input, shape index: {}]
  %s5 = inlined_call_operand.vmem [shape: bf16[32,32], index: 5, kind: input, shape index: {}]
  %s6 = inlined_call_operand.vmem [shape: f32[1,32], index: 6, kind: input, shape index: {}]
  %s7 = inlined_call_operand.hbm [shape: bf16[32,32], index: 7, kind: input, shape index: {}]
  %s8 = inlined_call_operand.hbm [shape: f32[1,32], index: 8, kind: input, shape index: {}]
  %s9 = inlined_call_operand.vmem [shape: bf16[32,32], index: 9, kind: input, shape index: {}]
  %s10 = inlined_call_operand.vmem [shape: f32[1,32], index: 10, kind: input, shape index: {}]
  %s11 = inlined_call_operand.hbm [shape: f32[2,8,32], index: 11, kind: output, shape index: {}]
  %s12 = sld [smem:[#allocation0]]
  $region109: #{tpu_custom_call.1} parent=0
    _
  %s14 = ssub.s32 1, %s12
  %s15 = scalar_select 0, %s14, %s12
  $region1: #{tpu_custom_call.1} parent=0
    #allocation6 [shape = 'u8[8192]{0}', space=vmem, size = 0x2000, scoped, tag = 'input window, operand 0']
    #allocation7 [shape = 's32[2]{0}', space=sflag, size = 0x8, scoped, tag = 'scoped memory for tpu_custom_call.1']
    #allocation8 [shape = 's32[2]{0}', space=sflag, size = 0x8, scoped, tag = 'scoped memory for tpu_custom_call.1']
    #allocation9 [shape = 'u8[8192]{0}', space=vmem, size = 0x2000, scoped, tag = 'input window, operand 1']
    #allocation10 [shape = 's32[2]{0}', space=sflag, size = 0x8, scoped, tag = 'scoped memory for tpu_custom_call.1']
    #allocation11 [shape = 'u8[8192]{0}', space=vmem, size = 0x2000, scoped, tag = 'input window, operand 2']
    #allocation12 [shape = 'u8[8192]{0}', space=vmem, size = 0x2000, scoped, tag = 'input window, operand 3, single buffered']
    #allocation13 [shape = 's32[1]{0}', space=sflag, size = 0x4, scoped, tag = 'scoped memory for tpu_custom_call.1']
    #allocation14 [shape = 'u8[8192]{0}', space=vmem, size = 0x2000, scoped, tag = 'input window, operand 7, single buffered']
    #allocation15 [shape = 'u8[512]{0}', space=vmem, size = 0x400, scoped, tag = 'input window, operand 8, single buffered']
    #allocation16 [shape = 's32[1]{0}', space=sflag, size = 0x4, scoped, tag = 'scoped memory for tpu_custom_call.1']
    #allocation17 [shape = 'u8[8192]{0}', space=vmem, size = 0x2000, scoped, tag = 'output window, operand 0']
    %16 = vsyncpa [#allocation7], 0
    %s17 = scalar_lea.sflag [#allocation7], 1
    %18 = vsyncpa %s17, 0
    %19 = vsyncpa [#allocation10], 0
    %s20 = scalar_lea.sflag [#allocation10], 1
    %21 = vsyncpa %s20, 0
    %22 = vsyncpa [#allocation13], 0
    %23 = vsyncpa [#allocation16], 0
    %24 = vsyncpa [#allocation8], 0
    %s25 = scalar_lea.sflag [#allocation8], 1
    %26 = vsyncpa %s25, 0
    loop: start=0, step=1, limit=4
    $region2: #{tpu_custom_call.1} parent=1 // loop_pre_header
      _
    $region3: #{tpu_custom_call.1} parent=1 // loop_header
      %s28 = sphi 0, %s32
      %p29 = scmp.ge.s32.totalorder %s28, 4
      %s35 = sphi 0, %s54
      %s36 = sphi 0, %s50
      %s37 = sphi 0, %s46
      %s38 = sphi 0, %s35
      %s39 = sphi 0, %s36
      %s40 = sphi 0, %s37
      %s41 = sphi 0, %s38
      %s42 = sphi 0, %s39
      %s43 = sphi 0, %s40
      %s59 = sphi 0, %s61
      %s62 = sphi 0, %s59
      %s63 = sphi 0, %s62
      %s79 = sphi 0, %s63
      %s87 = sphi 0, %s89
      %s90 = sphi 0, %s87
      %s91 = sphi 0, %s90
      %s107 = sphi 0, %s91
      %s115 = sphi 0, %s117
      %s118 = sphi 0, %s115
      %s119 = sphi 0, %s118
      %s135 = sphi 0, %s119
      %s139 = sphi 0, %s139
      %s141 = sphi 0, %s139
      %s142 = sphi 0, %s141
      %s156 = sphi 0, %s142
      %s160 = sphi 0, %s160
      %s162 = sphi 0, %s160
      %s163 = sphi 0, %s162
      %s177 = sphi 0, %s163
      %s181 = sphi 0, %s181
      %s183 = sphi 0, %s181
      %s184 = sphi 0, %s183
      %s198 = sphi 0, %s184
      %s202 = sphi 0, %s202
      %s204 = sphi 0, %s202
      %s205 = sphi 0, %s204
      %s219 = sphi 0, %s205
      %s223 = sphi 0, %s223
      %s225 = sphi 0, %s223
      %s226 = sphi 0, %s225
      %s240 = sphi 0, %s226
      %s244 = sphi 0, %s244
      %s246 = sphi 0, %s244
      %s247 = sphi 0, %s246
      %s261 = sphi 0, %s247
      %s265 = sphi 0, %s265
      %s267 = sphi 0, %s265
      %s268 = sphi 0, %s267
      %s282 = sphi 0, %s268
      %s286 = sphi 0, %s286
      %s288 = sphi 0, %s286
      %s289 = sphi 0, %s288
      %s303 = sphi 0, %s289
      %s311 = sphi 0, %s313
      %s314 = sphi 0, %s311
      %s315 = sphi 0, %s314
      %s331 = sphi 0, %s315
    $region4: #{tpu_custom_call.1} parent=1 // loop_header_branch
      %31 = sbr.rel (%p29) target = $region8
    $region5: #{tpu_custom_call.1} parent=1 // loop_body
      %s33 = ssub.s32 %s28, 1
      %s34 = ssub.s32 %s28, 2
      %s44 = sadd.s32 1, %s37
      %p45 = scmp.ge.s32.totalorder %s44, 1
      %s46 = scalar_select %p45, 0, %s44
      %s47 = sadd.s32 1, %s36
      %s48 = scalar_select %p45, %s47, %s36
      %p49 = scmp.ge.s32.totalorder %s48, 1
      %s50 = scalar_select %p49, 0, %s48
      %s51 = sadd.s32 1, %s35
      %s52 = scalar_select %p49, %s51, %s35
      %p53 = scmp.ge.s32.totalorder %s52, 2
      %s54 = scalar_select %p53, 0, %s52
      %s55 = ssub.s32 %s35, %s54
      %s56 = ssub.s32 %s36, %s50
      %s57 = sor.u32 %s55, %s56
      %p58 = scmp.eq.s32.totalorder %s57, 0
      %s60 = sadd.s32 %s59, 1
      %s61 = scalar_select %p58, %s59, %s60
      %p64 = pneg %p58
      %p65 = scmp.eq.s32.totalorder %s28, 1
      %p66 = por %p64, %p65
      %p67 = scmp.ne.s32.totalorder %s59, %s62
      %p68 = scmp.eq.s32.totalorder %s28, 0
      %p69 = por %p67, %p68
      %p70 = scmp.ne.s32.totalorder %s59, %s62
      %p71 = scmp.eq.s32.totalorder %s33, 1
      %p72 = por %p70, %p71
      %p73 = scmp.ne.s32.totalorder %s62, %s63
      %p74 = scmp.eq.s32.totalorder %s33, 0
      %p75 = por %p73, %p74
      %p76 = scmp.ne.s32.totalorder %s62, %s63
      %p77 = scmp.eq.s32.totalorder %s34, 1
      %p78 = por %p76, %p77
      %p80 = scmp.ne.s32.totalorder %s63, %s79
      %p81 = scmp.eq.s32.totalorder %s34, 0
      %p82 = por %p80, %p81
      %s83 = ssub.s32 %s35, %s54
      %s84 = ssub.s32 %s37, %s46
      %s85 = sor.u32 %s83, %s84
      %p86 = scmp.eq.s32.totalorder %s85, 0
      %s88 = sadd.s32 %s87, 1
      %s89 = scalar_select %p86, %s87, %s88
      %p92 = pneg %p86
      %p93 = scmp.eq.s32.totalorder %s28, 1
      %p94 = por %p92, %p93
      %p95 = scmp.ne.s32.totalorder %s87, %s90
      %p96 = scmp.eq.s32.totalorder %s28, 0
      %p97 = por %p95, %p96
      %p98 = scmp.ne.s32.totalorder %s87, %s90
      %p99 = scmp.eq.s32.totalorder %s33, 1
      %p100 = por %p98, %p99
      %p101 = scmp.ne.s32.totalorder %s90, %s91
      %p102 = scmp.eq.s32.totalorder %s33, 0
      %p103 = por %p101, %p102
      %p104 = scmp.ne.s32.totalorder %s90, %s91
      %p105 = scmp.eq.s32.totalorder %s34, 1
      %p106 = por %p104, %p105
      %p108 = scmp.ne.s32.totalorder %s91, %s107
      %p109 = scmp.eq.s32.totalorder %s34, 0
      %p110 = por %p108, %p109
      %s111 = ssub.s32 %s35, %s54
      %s112 = ssub.s32 %s37, %s46
      %s113 = sor.u32 %s111, %s112
      %p114 = scmp.eq.s32.totalorder %s113, 0
      %s116 = sadd.s32 %s115, 1
      %s117 = scalar_select %p114, %s115, %s116
      %p120 = pneg %p114
      %p121 = scmp.eq.s32.totalorder %s28, 1
      %p122 = por %p120, %p121
      %p123 = scmp.ne.s32.totalorder %s115, %s118
      %p124 = scmp.eq.s32.totalorder %s28, 0
      %p125 = por %p123, %p124
      %p126 = scmp.ne.s32.totalorder %s115, %s118
      %p127 = scmp.eq.s32.totalorder %s33, 1
      %p128 = por %p126, %p127
      %p129 = scmp.ne.s32.totalorder %s118, %s119
      %p130 = scmp.eq.s32.totalorder %s33, 0
      %p131 = por %p129, %p130
      %p132 = scmp.ne.s32.totalorder %s118, %s119
      %p133 = scmp.eq.s32.totalorder %s34, 1
      %p134 = por %p132, %p133
      %p136 = scmp.ne.s32.totalorder %s119, %s135
      %p137 = scmp.eq.s32.totalorder %s34, 0
      %p138 = por %p136, %p137
      %s140 = sadd.s32 %s139, 1
      %p143 = scmp.eq.s32.totalorder %s28, 1
      %p144 = scmp.ne.s32.totalorder %s139, %s141
      %p145 = scmp.eq.s32.totalorder %s28, 0
      %p146 = por %p144, %p145
      %p147 = scmp.ne.s32.totalorder %s139, %s141
      %p148 = scmp.eq.s32.totalorder %s33, 1
      %p149 = por %p147, %p148
      %p150 = scmp.ne.s32.totalorder %s141, %s142
      %p151 = scmp.eq.s32.totalorder %s33, 0
      %p152 = por %p150, %p151
      %p153 = scmp.ne.s32.totalorder %s141, %s142
      %p154 = scmp.eq.s32.totalorder %s34, 1
      %p155 = por %p153, %p154
      %p157 = scmp.ne.s32.totalorder %s142, %s156
      %p158 = scmp.eq.s32.totalorder %s34, 0
      %p159 = por %p157, %p158
      %s161 = sadd.s32 %s160, 1
      %p164 = scmp.eq.s32.totalorder %s28, 1
      %p165 = scmp.ne.s32.totalorder %s160, %s162
      %p166 = scmp.eq.s32.totalorder %s28, 0
      %p167 = por %p165, %p166
      %p168 = scmp.ne.s32.totalorder %s160, %s162
      %p169 = scmp.eq.s32.totalorder %s33, 1
      %p170 = por %p168, %p169
      %p171 = scmp.ne.s32.totalorder %s162, %s163
      %p172 = scmp.eq.s32.totalorder %s33, 0
      %p173 = por %p171, %p172
      %p174 = scmp.ne.s32.totalorder %s162, %s163
      %p175 = scmp.eq.s32.totalorder %s34, 1
      %p176 = por %p174, %p175
      %p178 = scmp.ne.s32.totalorder %s163, %s177
      %p179 = scmp.eq.s32.totalorder %s34, 0
      %p180 = por %p178, %p179
      %s182 = sadd.s32 %s181, 1
      %p185 = scmp.eq.s32.totalorder %s28, 1
      %p186 = scmp.ne.s32.totalorder %s181, %s183
      %p187 = scmp.eq.s32.totalorder %s28, 0
      %p188 = por %p186, %p187
      %p189 = scmp.ne.s32.totalorder %s181, %s183
      %p190 = scmp.eq.s32.totalorder %s33, 1
      %p191 = por %p189, %p190
      %p192 = scmp.ne.s32.totalorder %s183, %s184
      %p193 = scmp.eq.s32.totalorder %s33, 0
      %p194 = por %p192, %p193
      %p195 = scmp.ne.s32.totalorder %s183, %s184
      %p196 = scmp.eq.s32.totalorder %s34, 1
      %p197 = por %p195, %p196
      %p199 = scmp.ne.s32.totalorder %s184, %s198
      %p200 = scmp.eq.s32.totalorder %s34, 0
      %p201 = por %p199, %p200
      %s203 = sadd.s32 %s202, 1
      %p206 = scmp.eq.s32.totalorder %s28, 1
      %p207 = scmp.ne.s32.totalorder %s202, %s204
      %p208 = scmp.eq.s32.totalorder %s28, 0
      %p209 = por %p207, %p208
      %p210 = scmp.ne.s32.totalorder %s202, %s204
      %p211 = scmp.eq.s32.totalorder %s33, 1
      %p212 = por %p210, %p211
      %p213 = scmp.ne.s32.totalorder %s204, %s205
      %p214 = scmp.eq.s32.totalorder %s33, 0
      %p215 = por %p213, %p214
      %p216 = scmp.ne.s32.totalorder %s204, %s205
      %p217 = scmp.eq.s32.totalorder %s34, 1
      %p218 = por %p216, %p217
      %p220 = scmp.ne.s32.totalorder %s205, %s219
      %p221 = scmp.eq.s32.totalorder %s34, 0
      %p222 = por %p220, %p221
      %s224 = sadd.s32 %s223, 1
      %p227 = scmp.eq.s32.totalorder %s28, 1
      %p228 = scmp.ne.s32.totalorder %s223, %s225
      %p229 = scmp.eq.s32.totalorder %s28, 0
      %p230 = por %p228, %p229
      %p231 = scmp.ne.s32.totalorder %s223, %s225
      %p232 = scmp.eq.s32.totalorder %s33, 1
      %p233 = por %p231, %p232
      %p234 = scmp.ne.s32.totalorder %s225, %s226
      %p235 = scmp.eq.s32.totalorder %s33, 0
      %p236 = por %p234, %p235
      %p237 = scmp.ne.s32.totalorder %s225, %s226
      %p238 = scmp.eq.s32.totalorder %s34, 1
      %p239 = por %p237, %p238
      %p241 = scmp.ne.s32.totalorder %s226, %s240
      %p242 = scmp.eq.s32.totalorder %s34, 0
      %p243 = por %p241, %p242
      %s245 = sadd.s32 %s244, 1
      %p248 = scmp.eq.s32.totalorder %s28, 1
      %p249 = scmp.ne.s32.totalorder %s244, %s246
      %p250 = scmp.eq.s32.totalorder %s28, 0
      %p251 = por %p249, %p250
      %p252 = scmp.ne.s32.totalorder %s244, %s246
      %p253 = scmp.eq.s32.totalorder %s33, 1
      %p254 = por %p252, %p253
      %p255 = scmp.ne.s32.totalorder %s246, %s247
      %p256 = scmp.eq.s32.totalorder %s33, 0
      %p257 = por %p255, %p256
      %p258 = scmp.ne.s32.totalorder %s246, %s247
      %p259 = scmp.eq.s32.totalorder %s34, 1
      %p260 = por %p258, %p259
      %p262 = scmp.ne.s32.totalorder %s247, %s261
      %p263 = scmp.eq.s32.totalorder %s34, 0
      %p264 = por %p262, %p263
      %s266 = sadd.s32 %s265, 1
      %p269 = scmp.eq.s32.totalorder %s28, 1
      %p270 = scmp.ne.s32.totalorder %s265, %s267
      %p271 = scmp.eq.s32.totalorder %s28, 0
      %p272 = por %p270, %p271
      %p273 = scmp.ne.s32.totalorder %s265, %s267
      %p274 = scmp.eq.s32.totalorder %s33, 1
      %p275 = por %p273, %p274
      %p276 = scmp.ne.s32.totalorder %s267, %s268
      %p277 = scmp.eq.s32.totalorder %s33, 0
      %p278 = por %p276, %p277
      %p279 = scmp.ne.s32.totalorder %s267, %s268
      %p280 = scmp.eq.s32.totalorder %s34, 1
      %p281 = por %p279, %p280
      %p283 = scmp.ne.s32.totalorder %s268, %s282
      %p284 = scmp.eq.s32.totalorder %s34, 0
      %p285 = por %p283, %p284
      %s287 = sadd.s32 %s286, 1
      %p290 = scmp.eq.s32.totalorder %s28, 1
      %p291 = scmp.ne.s32.totalorder %s286, %s288
      %p292 = scmp.eq.s32.totalorder %s28, 0
      %p293 = por %p291, %p292
      %p294 = scmp.ne.s32.totalorder %s286, %s288
      %p295 = scmp.eq.s32.totalorder %s33, 1
      %p296 = por %p294, %p295
      %p297 = scmp.ne.s32.totalorder %s288, %s289
      %p298 = scmp.eq.s32.totalorder %s33, 0
      %p299 = por %p297, %p298
      %p300 = scmp.ne.s32.totalorder %s288, %s289
      %p301 = scmp.eq.s32.totalorder %s34, 1
      %p302 = por %p300, %p301
      %p304 = scmp.ne.s32.totalorder %s289, %s303
      %p305 = scmp.eq.s32.totalorder %s34, 0
      %p306 = por %p304, %p305
      %s307 = ssub.s32 %s35, %s54
      %s308 = ssub.s32 %s36, %s50
      %s309 = sor.u32 %s307, %s308
      %p310 = scmp.eq.s32.totalorder %s309, 0
      %s312 = sadd.s32 %s311, 1
      %s313 = scalar_select %p310, %s311, %s312
      %p316 = pneg %p310
      %p317 = scmp.eq.s32.totalorder %s28, 1
      %p318 = por %p316, %p317
      %p319 = scmp.ne.s32.totalorder %s311, %s314
      %p320 = scmp.eq.s32.totalorder %s28, 0
      %p321 = por %p319, %p320
      %p322 = scmp.ne.s32.totalorder %s311, %s314
      %p323 = scmp.eq.s32.totalorder %s33, 1
      %p324 = por %p322, %p323
      %p325 = scmp.ne.s32.totalorder %s314, %s315
      %p326 = scmp.eq.s32.totalorder %s33, 0
      %p327 = por %p325, %p326
      %p328 = scmp.ne.s32.totalorder %s314, %s315
      %p329 = scmp.eq.s32.totalorder %s34, 1
      %p330 = por %p328, %p329
      %p332 = scmp.ne.s32.totalorder %s315, %s331
      %p333 = scmp.eq.s32.totalorder %s34, 0
      %p334 = por %p332, %p333
      %p335 = scmp.le.s32.totalorder 1, %s28
      %p336 = scmp.lt.s32.totalorder %s28, 3
      %p337 = pnand %p335, %p336
      %p338 = pneg %p337
      // Predicated region
      $region9: #{tpu_custom_call.1} parent=5 // pred_check
        _
      $region10: #{tpu_custom_call.1} parent=5 // pred_check_branch
        %340 = sbr.rel (%p337) target = $region12
      $region11: #{tpu_custom_call.1} parent=5 // pred_region
        %s341 = ssub.s32 %s28, 1
        // Predicated region
        $region13: #{tpu_custom_call.1} parent=11 // pred_check
          %p342 = pneg %p152
        $region14: #{tpu_custom_call.1} parent=11 // pred_check_branch
          %344 = sbr.rel (%p342) target = $region16
        $region15: #{tpu_custom_call.1} parent=11 // pred_region
          %s346 = ssub.s32 256, 256
          %347 = vsyncadd [#allocation13], %s346
          %s348 = sshll.u32 [#allocation12], 4
          %s349 = int_to_ptr.vmem [resolvable:$true] %s348
          %354 = dma.hbm_to_vmem [thread:$0]  %s3, 256, %s349, [#allocation13], 64, 64, 4
        $region16: #{tpu_custom_call.1} parent=11 // pred_fallthru
          _
        // Predicated region
        $region17: #{tpu_custom_call.1} parent=11 // pred_check
          %p355 = pneg %p173
        $region18: #{tpu_custom_call.1} parent=11 // pred_check_branch
          %357 = sbr.rel (%p355) target = $region20
        $region19: #{tpu_custom_call.1} parent=11 // pred_region
          _
        $region20: #{tpu_custom_call.1} parent=11 // pred_fallthru
          _
        // Predicated region
        $region21: #{tpu_custom_call.1} parent=11 // pred_check
          %p358 = pneg %p194
        $region22: #{tpu_custom_call.1} parent=11 // pred_check_branch
          %360 = sbr.rel (%p358) target = $region24
        $region23: #{tpu_custom_call.1} parent=11 // pred_region
          _
        $region24: #{tpu_custom_call.1} parent=11 // pred_fallthru
          _
        // Predicated region
        $region25: #{tpu_custom_call.1} parent=11 // pred_check
          %p361 = pneg %p215
        $region26: #{tpu_custom_call.1} parent=11 // pred_check_branch
          %363 = sbr.rel (%p361) target = $region28
        $region27: #{tpu_custom_call.1} parent=11 // pred_region
          _
        $region28: #{tpu_custom_call.1} parent=11 // pred_fallthru
          _
        // Predicated region
        $region29: #{tpu_custom_call.1} parent=11 // pred_check
          %p364 = pneg %p236
        $region30: #{tpu_custom_call.1} parent=11 // pred_check_branch
          %366 = sbr.rel (%p364) target = $region32
        $region31: #{tpu_custom_call.1} parent=11 // pred_region
          %s368 = ssub.s32 256, 256
          %369 = vsyncadd [#allocation13], %s368
          %s370 = sshll.u32 [#allocation14], 4
          %s371 = int_to_ptr.vmem [resolvable:$true] %s370
          %376 = dma.hbm_to_vmem [thread:$0]  %s7, 256, %s371, [#allocation13], 64, 64, 4
        $region32: #{tpu_custom_call.1} parent=11 // pred_fallthru
          _
        // Predicated region
        $region33: #{tpu_custom_call.1} parent=11 // pred_check
          %p377 = pneg %p257
        $region34: #{tpu_custom_call.1} parent=11 // pred_check_branch
          %379 = sbr.rel (%p377) target = $region36
        $region35: #{tpu_custom_call.1} parent=11 // pred_region
          %s381 = ssub.s32 16, 16
          %382 = vsyncadd [#allocation16], %s381
          %s384 = sshll.u32 [#allocation15], 4
          %s385 = int_to_ptr.vmem [resolvable:$true] %s384
          %387 = dma.hbm_to_vmem [thread:$0]  %s8, 16, %s385, [#allocation16]
        $region36: #{tpu_custom_call.1} parent=11 // pred_fallthru
          _
        // Predicated region
        $region37: #{tpu_custom_call.1} parent=11 // pred_check
          %p388 = pneg %p278
        $region38: #{tpu_custom_call.1} parent=11 // pred_check_branch
          %390 = sbr.rel (%p388) target = $region40
        $region39: #{tpu_custom_call.1} parent=11 // pred_region
          _
        $region40: #{tpu_custom_call.1} parent=11 // pred_fallthru
          _
        // Predicated region
        $region41: #{tpu_custom_call.1} parent=11 // pred_check
          %p391 = pneg %p299
        $region42: #{tpu_custom_call.1} parent=11 // pred_check_branch
          %393 = sbr.rel (%p391) target = $region44
        $region43: #{tpu_custom_call.1} parent=11 // pred_region
          _
        $region44: #{tpu_custom_call.1} parent=11 // pred_fallthru
          _
      $region12: #{tpu_custom_call.1} parent=5 // pred_fallthru
        _
      %p394 = scmp.lt.s32.totalorder %s28, 2
      // Predicated region
      $region45: #{tpu_custom_call.1} parent=5 // pred_check
        %p395 = pneg %p394
      $region46: #{tpu_custom_call.1} parent=5 // pred_check_branch
        %397 = sbr.rel (%p395) target = $region48
      $region47: #{tpu_custom_call.1} parent=5 // pred_region
        // Predicated region
        $region49: #{tpu_custom_call.1} parent=47 // pred_check
          %p398 = pneg %p69
        $region50: #{tpu_custom_call.1} parent=47 // pred_check_branch
          %400 = sbr.rel (%p398) target = $region52
        $region51: #{tpu_custom_call.1} parent=47 // pred_region
          %s401 = sand.u32 %s59, 1
          %s402 = scalar_lea.sflag [#allocation7], %s401
          %s403 = sand.u32 %s59, 1
          %s404 = smul.addr %s403, 8
          %s405 = scalar_lea.vmem [#allocation6], %s404
          %s407 = ssub.s32 128, 128
          %408 = vsyncadd %s402, %s407
          %s409 = sadd.s32 %s36, %s35
          %s410 = smul.addr %s409, 128
          %s411 = scalar_lea.hbm %s0, %s410
          %s413 = sshll.u32 %s405, 4
          %s414 = int_to_ptr.vmem [resolvable:$true] %s413
          %416 = dma.hbm_to_vmem [thread:$0]  %s411, 128, %s414, %s402
        $region52: #{tpu_custom_call.1} parent=47 // pred_fallthru
          _
        // Predicated region
        $region53: #{tpu_custom_call.1} parent=47 // pred_check
          %p417 = pneg %p97
        $region54: #{tpu_custom_call.1} parent=47 // pred_check_branch
          %419 = sbr.rel (%p417) target = $region56
        $region55: #{tpu_custom_call.1} parent=47 // pred_region
          %s420 = sand.u32 %s28, 1
          %s421 = scalar_lea.sflag [#allocation10], %s420
          %s422 = sand.u32 %s87, 1
          %s423 = smul.addr %s422, 8
          %s424 = scalar_lea.vmem [#allocation9], %s423
          %s426 = ssub.s32 128, 128
          %427 = vsyncadd %s421, %s426
          %s428 = sadd.s32 %s37, %s35
          %s429 = smul.addr %s428, 128
          %s430 = scalar_lea.hbm %s1, %s429
          %s432 = sshll.u32 %s424, 4
          %s433 = int_to_ptr.vmem [resolvable:$true] %s432
          %435 = dma.hbm_to_vmem [thread:$0]  %s430, 128, %s433, %s421
        $region56: #{tpu_custom_call.1} parent=47 // pred_fallthru
          _
        // Predicated region
        $region57: #{tpu_custom_call.1} parent=47 // pred_check
          %p436 = pneg %p125
        $region58: #{tpu_custom_call.1} parent=47 // pred_check_branch
          %438 = sbr.rel (%p436) target = $region60
        $region59: #{tpu_custom_call.1} parent=47 // pred_region
          %s439 = sand.u32 %s28, 1
          %s440 = scalar_lea.sflag [#allocation10], %s439
          %s441 = sand.u32 %s115, 1
          %s442 = smul.addr %s441, 8
          %s443 = scalar_lea.vmem [#allocation11], %s442
          %s445 = ssub.s32 128, 128
          %446 = vsyncadd %s440, %s445
          %s447 = sadd.s32 %s37, %s35
          %s448 = smul.addr %s447, 128
          %s449 = scalar_lea.hbm %s2, %s448
          %s451 = sshll.u32 %s443, 4
          %s452 = int_to_ptr.vmem [resolvable:$true] %s451
          %454 = dma.hbm_to_vmem [thread:$0]  %s449, 128, %s452, %s440
        $region60: #{tpu_custom_call.1} parent=47 // pred_fallthru
          _
      $region48: #{tpu_custom_call.1} parent=5 // pred_fallthru
        _
      %p455 = scmp.le.s32.totalorder 1, %s28
      %p456 = scmp.lt.s32.totalorder %s28, 3
      %p457 = pnand %p455, %p456
      %p458 = pneg %p457
      // Predicated region
      $region61: #{tpu_custom_call.1} parent=5 // pred_check
        _
      $region62: #{tpu_custom_call.1} parent=5 // pred_check_branch
        %460 = sbr.rel (%p457) target = $region64
      $region63: #{tpu_custom_call.1} parent=5 // pred_region
        %s461 = ssub.s32 %s28, 1
        %s462 = sand.u32 %s62, 1
        %s463 = scalar_lea.sflag [#allocation7], %s462
        %s464 = sand.u32 %s62, 1
        %s465 = smul.addr %s464, 8
        %s466 = scalar_lea.vmem [#allocation6], %s465
        // Predicated region
        $region65: #{tpu_custom_call.1} parent=63 // pred_check
          %p467 = pneg %p75
        $region66: #{tpu_custom_call.1} parent=63 // pred_check_branch
          %469 = sbr.rel (%p467) target = $region68
        $region67: #{tpu_custom_call.1} parent=63 // pred_region
          %470 = dma.done %s463, 128
        $region68: #{tpu_custom_call.1} parent=63 // pred_fallthru
          _
        %s471 = sand.u32 %s33, 1
        %s472 = scalar_lea.sflag [#allocation10], %s471
        %s473 = sand.u32 %s90, 1
        %s474 = smul.addr %s473, 8
        %s475 = scalar_lea.vmem [#allocation9], %s474
        // Predicated region
        $region69: #{tpu_custom_call.1} parent=63 // pred_check
          %p476 = pneg %p103
        $region70: #{tpu_custom_call.1} parent=63 // pred_check_branch
          %478 = sbr.rel (%p476) target = $region72
        $region71: #{tpu_custom_call.1} parent=63 // pred_region
          %479 = dma.done %s472, 128
        $region72: #{tpu_custom_call.1} parent=63 // pred_fallthru
          _
        %s480 = sand.u32 %s33, 1
        %s481 = scalar_lea.sflag [#allocation10], %s480
        %s482 = sand.u32 %s118, 1
        %s483 = smul.addr %s482, 8
        %s484 = scalar_lea.vmem [#allocation11], %s483
        // Predicated region
        $region73: #{tpu_custom_call.1} parent=63 // pred_check
          %p485 = pneg %p131
        $region74: #{tpu_custom_call.1} parent=63 // pred_check_branch
          %487 = sbr.rel (%p485) target = $region76
        $region75: #{tpu_custom_call.1} parent=63 // pred_region
          %488 = dma.done %s481, 128
        $region76: #{tpu_custom_call.1} parent=63 // pred_fallthru
          _
        // Predicated region
        $region77: #{tpu_custom_call.1} parent=63 // pred_check
          %p489 = pneg %p152
        $region78: #{tpu_custom_call.1} parent=63 // pred_check_branch
          %491 = sbr.rel (%p489) target = $region80
        $region79: #{tpu_custom_call.1} parent=63 // pred_region
          %492 = dma.done [#allocation13], 256
        $region80: #{tpu_custom_call.1} parent=63 // pred_fallthru
          _
        // Predicated region
        $region81: #{tpu_custom_call.1} parent=63 // pred_check
          %p493 = pneg %p236
        $region82: #{tpu_custom_call.1} parent=63 // pred_check_branch
          %495 = sbr.rel (%p493) target = $region84
        $region83: #{tpu_custom_call.1} parent=63 // pred_region
          %496 = dma.done [#allocation13], 256
        $region84: #{tpu_custom_call.1} parent=63 // pred_fallthru
          _
        // Predicated region
        $region85: #{tpu_custom_call.1} parent=63 // pred_check
          %p497 = pneg %p257
        $region86: #{tpu_custom_call.1} parent=63 // pred_check_branch
          %499 = sbr.rel (%p497) target = $region88
        $region87: #{tpu_custom_call.1} parent=63 // pred_region
          %500 = dma.done [#allocation16], 16
        $region88: #{tpu_custom_call.1} parent=63 // pred_fallthru
          _
        %s501 = sand.u32 %s62, 1
        %s502 = scalar_lea.sflag [#allocation7], %s501
        %s503 = sand.u32 %s62, 1
        %s504 = smul.addr %s503, 8
        %s505 = scalar_lea.vmem [#allocation6], %s504
        %p506 = pneg %p75
        %p507 = pneg %p72
        %s508 = sand.u32 %s33, 1
        %s509 = scalar_lea.sflag [#allocation10], %s508
        %s510 = sand.u32 %s90, 1
        %s511 = smul.addr %s510, 8
        %s512 = scalar_lea.vmem [#allocation9], %s511
        %p513 = pneg %p103
        %p514 = pneg %p100
        %s515 = sand.u32 %s33, 1
        %s516 = scalar_lea.sflag [#allocation10], %s515
        %s517 = sand.u32 %s118, 1
        %s518 = smul.addr %s517, 8
        %s519 = scalar_lea.vmem [#allocation11], %s518
        %p520 = pneg %p131
        %p521 = pneg %p128
        %p522 = pneg %p152
        %p523 = pneg %p149
        %p524 = pneg %p173
        %p525 = pneg %p170
        %p526 = pneg %p194
        %p527 = pneg %p191
        %p528 = pneg %p215
        %p529 = pneg %p212
        %p530 = pneg %p236
        %p531 = pneg %p233
        %p532 = pneg %p257
        %p533 = pneg %p254
        %p534 = pneg %p278
        %p535 = pneg %p275
        %p536 = pneg %p299
        %p537 = pneg %p296
        %p538 = pneg %p327
        %p539 = pneg %p324
        %s540 = sand.u32 %s314, 1
        %s541 = scalar_lea.sflag [#allocation8], %s540
        %s542 = sand.u32 %s314, 1
        %s543 = smul.addr %s542, 8
        %s544 = scalar_lea.vmem [#allocation17], %s543
        %p546 = scmp.eq.s32.totalorder %s40, 0
        // Predicated region
        $region89: #{tpu_custom_call.1} parent=63 // pred_check
          %p547 = pneg %p546
        $region90: #{tpu_custom_call.1} parent=63 // pred_check_branch
          %549 = sbr.rel (%p547) target = $region92
        $region91: #{tpu_custom_call.1} parent=63 // pred_region
          %v550 = vld [vmem:[%s466] sm:$0xff]
          %v551 = vpack.c.bf16 %v550, %v550
          %v552 = vld [vmem:[#allocation12] sm:$0xf]
          %v553 = vld [vmem:[#allocation12 + $0x4] sm:$0xf]
          %v554 = vld [vmem:[#allocation12 + $0x8] sm:$0xf]
          %v555 = vld [vmem:[#allocation12 + $0xc] sm:$0xf]
          %v556 = vld [vmem:[%s4] sm:$0x1]
          %v558 = vlaneseq
          %v559 = vshrl.u32 %v558, 7
          %v560 = vsub.s32 0, %v559
          %v561 = vrot.slane %v556, %v560
          %v567 = vunpack.c.l.b16 %v552
          %v568 = vunpack.c.l.b16 %v553
          %v569 = vunpack.c.l.b16 %v554
          %v570 = vunpack.c.l.b16 %v555
          %v571 = vpack.c.b16 %v568, %v567
          %v572 = vpack.c.b16 %v570, %v569
          %vm575 = vcmask 261120
          %v577 = vsel %vm575, %v551, 0
          %579 = vmatprep.subr.bf16.mxu0 0
          %580 = vmatpush1.bf16.msra.mxu0 %v571
          %581 = vmatprep.subr.bf16.mxu0 0
          %582 = vmatpush1.bf16.msra.mxu0 %v572
          %583 = vmatprep.subr.bf16.mxu0 0
          %584 = vmatpush1.bf16.msra.mxu0 0
          %585 = vmatprep.subr.bf16.mxu0 0
          %586 = vmatpush1.bf16.msra.mxu0 0
          %587 = vmatprep.subr.bf16.mxu0 0
          %588 = vmatpush1.bf16.msra.mxu0 0
          %589 = vmatprep.subr.bf16.mxu0 0
          %590 = vmatpush1.bf16.msra.mxu0 0
          %591 = vmatprep.subr.bf16.mxu0 0
          %592 = vmatpush1.bf16.msra.mxu0 0
          %593 = vmatprep.subr.bf16.mxu0 0
          %594 = vmatpush1.bf16.msra.mxu0 0
          %595 = vmatprep.subr.bf16.mxu0 0
          %596 = vmatpush1.bf16.msra.mxu0 0
          %597 = vmatprep.subr.bf16.mxu0 0
          %598 = vmatpush1.bf16.msra.mxu0 0
          %599 = vmatprep.subr.bf16.mxu0 0
          %600 = vmatpush1.bf16.msra.mxu0 0
          %601 = vmatprep.subr.bf16.mxu0 0
          %602 = vmatpush1.bf16.msra.mxu0 0
          %603 = vmatprep.subr.bf16.mxu0 0
          %604 = vmatpush1.bf16.msra.mxu0 0
          %605 = vmatprep.subr.bf16.mxu0 0
          %606 = vmatpush1.bf16.msra.mxu0 0
          %607 = vmatprep.subr.bf16.mxu0 0
          %608 = vmatpush1.bf16.msra.mxu0 0
          %609 = vmatprep.subr.bf16.mxu0 0
          %610 = vmatpush1.bf16.msra.mxu0 0
          %611 = vmatprep.mubr.bf16.mxu0 0
          %612 = vmatmul.mubr.bf16.gmra.mrb[0].mxu0 %v577
          %v613 = vpop.f32.mrb[0].mxu0
          %v614 = vadd.f32 %v561, %v613
          %v615 = vpop.f32.mrb[0].mxu0
          %v616 = vpop.f32.mrb[0].mxu0
          %v617 = vpop.f32.mrb[0].mxu0
          %618 = vdwg.mxu0
          %v619 = vpack.c.bf16 %v614, %v614
          %vm620 = vcmask 257024
          %621 = vst.msk [vmem:[#allocation2] sm:$0xf] %vm620, %v619
          %vm622 = vcmask 7168
          %623 = vst.msk [vmem:[#allocation3] sm:$0xff] %vm622, -inf
          %624 = vst.msk [vmem:[#allocation3 + $0x8] sm:$0xff] %vm622, -inf
          %625 = vst.msk [vmem:[#allocation3 + $0x10] sm:$0xff] %vm622, -inf
          %626 = vst.msk [vmem:[#allocation3 + $0x18] sm:$0xff] %vm622, -inf
          %627 = vst.msk [vmem:[#allocation4] sm:$0xff] %vm622, 0.0
          %628 = vst.msk [vmem:[#allocation4 + $0x8] sm:$0xff] %vm622, 0.0
          %629 = vst.msk [vmem:[#allocation4 + $0x10] sm:$0xff] %vm622, 0.0
          %630 = vst.msk [vmem:[#allocation4 + $0x18] sm:$0xff] %vm622, 0.0
          %vm631 = vcmask 64512
          %632 = vst.msk [vmem:[#allocation5] sm:$0xff] %vm631, 0.0
          %633 = vst.msk [vmem:[#allocation5 + $0x8] sm:$0xff] %vm631, 0.0
          %634 = vst.msk [vmem:[#allocation5 + $0x10] sm:$0xff] %vm631, 0.0
          %635 = vst.msk [vmem:[#allocation5 + $0x18] sm:$0xff] %vm631, 0.0
        $region92: #{tpu_custom_call.1} parent=63 // pred_fallthru
          _
        %v636 = vld [vmem:[%s475] sm:$0xff]
        %v637 = vpack.c.bf16 %v636, %v636
        %v638 = vld [vmem:[%s5] sm:$0xf]
        %v639 = vld [vmem:[%s5 + $0x4] sm:$0xf]
        %v640 = vld [vmem:[%s5 + $0x8] sm:$0xf]
        %v641 = vld [vmem:[%s5 + $0xc] sm:$0xf]
        %v642 = vld [vmem:[%s6] sm:$0x1]
        %v644 = vlaneseq
        %v645 = vshrl.u32 %v644, 7
        %v646 = vsub.s32 0, %v645
        %v647 = vrot.slane %v642, %v646
        %v653 = vunpack.c.l.b16 %v638
        %v654 = vunpack.c.l.b16 %v639
        %v655 = vunpack.c.l.b16 %v640
        %v656 = vunpack.c.l.b16 %v641
        %v657 = vpack.c.b16 %v654, %v653
        %v658 = vpack.c.b16 %v656, %v655
        %vm661 = vcmask 261120
        %v663 = vsel %vm661, %v637, 0
        %665 = vmatprep.subr.bf16.mxu0 0
        %666 = vmatpush1.bf16.msra.mxu0 %v657
        %667 = vmatprep.subr.bf16.mxu0 0
        %668 = vmatpush1.bf16.msra.mxu0 %v658
        %669 = vmatprep.subr.bf16.mxu0 0
        %670 = vmatpush1.bf16.msra.mxu0 0
        %671 = vmatprep.subr.bf16.mxu0 0
        %672 = vmatpush1.bf16.msra.mxu0 0
        %673 = vmatprep.subr.bf16.mxu0 0
        %674 = vmatpush1.bf16.msra.mxu0 0
        %675 = vmatprep.subr.bf16.mxu0 0
        %676 = vmatpush1.bf16.msra.mxu0 0
        %677 = vmatprep.subr.bf16.mxu0 0
        %678 = vmatpush1.bf16.msra.mxu0 0
        %679 = vmatprep.subr.bf16.mxu0 0
        %680 = vmatpush1.bf16.msra.mxu0 0
        %681 = vmatprep.subr.bf16.mxu0 0
        %682 = vmatpush1.bf16.msra.mxu0 0
        %683 = vmatprep.subr.bf16.mxu0 0
        %684 = vmatpush1.bf16.msra.mxu0 0
        %685 = vmatprep.subr.bf16.mxu0 0
        %686 = vmatpush1.bf16.msra.mxu0 0
        %687 = vmatprep.subr.bf16.mxu0 0
        %688 = vmatpush1.bf16.msra.mxu0 0
        %689 = vmatprep.subr.bf16.mxu0 0
        %690 = vmatpush1.bf16.msra.mxu0 0
        %691 = vmatprep.subr.bf16.mxu0 0
        %692 = vmatpush1.bf16.msra.mxu0 0
        %693 = vmatprep.subr.bf16.mxu0 0
        %694 = vmatpush1.bf16.msra.mxu0 0
        %695 = vmatprep.subr.bf16.mxu0 0
        %696 = vmatpush1.bf16.msra.mxu0 0
        %697 = vmatprep.mubr.bf16.mxu0 0
        %698 = vmatmul.mubr.bf16.gmra.mrb[0].mxu0 %v663
        %v699 = vpop.f32.mrb[0].mxu0
        %v700 = vadd.f32 %v647, %v699
        %v701 = vpop.f32.mrb[0].mxu0
        %v702 = vpop.f32.mrb[0].mxu0
        %v703 = vpop.f32.mrb[0].mxu0
        %704 = vdwg.mxu0
        %v705 = vpack.c.bf16 %v700, %v700
        %v706 = vld [vmem:[%s484] sm:$0xff]
        %v707 = vpack.c.bf16 %v706, %v706
        %v708 = vld [vmem:[#allocation14] sm:$0xf]
        %v709 = vld [vmem:[#allocation14 + $0x4] sm:$0xf]
        %v710 = vld [vmem:[#allocation14 + $0x8] sm:$0xf]
        %v711 = vld [vmem:[#allocation14 + $0xc] sm:$0xf]
        %v712 = vld [vmem:[#allocation15] sm:$0x1]
        %v714 = vlaneseq
        %v715 = vshrl.u32 %v714, 7
        %v716 = vsub.s32 0, %v715
        %v717 = vrot.slane %v712, %v716
        %v723 = vunpack.c.l.b16 %v708
        %v724 = vunpack.c.l.b16 %v709
        %v725 = vunpack.c.l.b16 %v710
        %v726 = vunpack.c.l.b16 %v711
        %v727 = vpack.c.b16 %v724, %v723
        %v728 = vpack.c.b16 %v726, %v725
        %v732 = vsel %vm661, %v707, 0
        %734 = vmatprep.subr.bf16.mxu0 0
        %735 = vmatpush1.bf16.msra.mxu0 %v727
        %736 = vmatprep.subr.bf16.mxu0 0
        %737 = vmatpush1.bf16.msra.mxu0 %v728
        %738 = vmatprep.subr.bf16.mxu0 0
        %739 = vmatpush1.bf16.msra.mxu0 0
        %740 = vmatprep.subr.bf16.mxu0 0
        %741 = vmatpush1.bf16.msra.mxu0 0
        %742 = vmatprep.subr.bf16.mxu0 0
        %743 = vmatpush1.bf16.msra.mxu0 0
        %744 = vmatprep.subr.bf16.mxu0 0
        %745 = vmatpush1.bf16.msra.mxu0 0
        %746 = vmatprep.subr.bf16.mxu0 0
        %747 = vmatpush1.bf16.msra.mxu0 0
        %748 = vmatprep.subr.bf16.mxu0 0
        %749 = vmatpush1.bf16.msra.mxu0 0
        %750 = vmatprep.subr.bf16.mxu0 0
        %751 = vmatpush1.bf16.msra.mxu0 0
        %752 = vmatprep.subr.bf16.mxu0 0
        %753 = vmatpush1.bf16.msra.mxu0 0
        %754 = vmatprep.subr.bf16.mxu0 0
        %755 = vmatpush1.bf16.msra.mxu0 0
        %756 = vmatprep.subr.bf16.mxu0 0
        %757 = vmatpush1.bf16.msra.mxu0 0
        %758 = vmatprep.subr.bf16.mxu0 0
        %759 = vmatpush1.bf16.msra.mxu0 0
        %760 = vmatprep.subr.bf16.mxu0 0
        %761 = vmatpush1.bf16.msra.mxu0 0
        %762 = vmatprep.subr.bf16.mxu0 0
        %763 = vmatpush1.bf16.msra.mxu0 0
        %764 = vmatprep.subr.bf16.mxu0 0
        %765 = vmatpush1.bf16.msra.mxu0 0
        %766 = vmatprep.mubr.bf16.mxu0 0
        %767 = vmatmul.mubr.bf16.gmra.mrb[0].mxu0 %v732
        %v768 = vpop.f32.mrb[0].mxu0
        %v769 = vadd.f32 %v717, %v768
        %v770 = vpop.f32.mrb[0].mxu0
        %v771 = vpop.f32.mrb[0].mxu0
        %v772 = vpop.f32.mrb[0].mxu0
        %773 = vdwg.mxu0
        %v774 = vpack.c.bf16 %v769, %v769
        %v775 = vld [vmem:[#allocation2] sm:$0xf]
        %vm776 = vcmask 64512
        %v778 = vsel %vm776, %v775, 0
        %v781 = vsel %vm776, %v705, 0
        %783 = vmatprep.subr.bf16.mxu0 0
        %784 = vmatpush1.bf16.xpose.msra.mxu0 %v781
        %785 = vmatprep.subr.bf16.mxu0 0
        %786 = vmatpush1.bf16.xpose.msra.mxu0 0
        %787 = vmatprep.subr.bf16.mxu0 0
        %788 = vmatpush1.bf16.xpose.msra.mxu0 0
        %789 = vmatprep.subr.bf16.mxu0 0
        %790 = vmatpush1.bf16.xpose.msra.mxu0 0
        %791 = vmatprep.subr.bf16.mxu0 0
        %792 = vmatpush1.bf16.xpose.msra.mxu0 0
        %793 = vmatprep.subr.bf16.mxu0 0
        %794 = vmatpush1.bf16.xpose.msra.mxu0 0
        %795 = vmatprep.subr.bf16.mxu0 0
        %796 = vmatpush1.bf16.xpose.msra.mxu0 0
        %797 = vmatprep.subr.bf16.mxu0 0
        %798 = vmatpush1.bf16.xpose.msra.mxu0 0
        %799 = vmatprep.subr.bf16.mxu0 0
        %800 = vmatpush1.bf16.xpose.msra.mxu0 0
        %801 = vmatprep.subr.bf16.mxu0 0
        %802 = vmatpush1.bf16.xpose.msra.mxu0 0
        %803 = vmatprep.subr.bf16.mxu0 0
        %804 = vmatpush1.bf16.xpose.msra.mxu0 0
        %805 = vmatprep.subr.bf16.mxu0 0
        %806 = vmatpush1.bf16.xpose.msra.mxu0 0
        %807 = vmatprep.subr.bf16.mxu0 0
        %808 = vmatpush1.bf16.xpose.msra.mxu0 0
        %809 = vmatprep.subr.bf16.mxu0 0
        %810 = vmatpush1.bf16.xpose.msra.mxu0 0
        %811 = vmatprep.subr.bf16.mxu0 0
        %812 = vmatpush1.bf16.xpose.msra.mxu0 0
        %813 = vmatprep.subr.bf16.mxu0 0
        %814 = vmatpush1.bf16.xpose.msra.mxu0 0
        %815 = vmatprep.mubr.bf16.mxu0 0
        %816 = vmatmul.mubr.bf16.gmra.mrb[0].mxu0 %v778
        %v817 = vpop.f32.mrb[0].mxu0
        %v818 = vadd.f32 0.0, %v817
        %v819 = vpop.f32.mrb[0].mxu0
        %v820 = vpop.f32.mrb[0].mxu0
        %v821 = vpop.f32.mrb[0].mxu0
        %822 = vdwg.mxu0
        %v823 = vld [vmem:[#allocation3] sm:$0xff]
        %v824 = vsel %vm776, %v818, -inf
        %825 = vmax.xlane.f32.xlu0 %v824
        %v826 = vpop.xlane.xlu0 %825
        %v827 = vmax.f32 %v823, %v826
        %v828 = vsub.f32 %v823, %v827
        %v829 = vmul.f32 %v828, 1.442695
        %v830 = vpow.pop %v829
        %832 = vset.pattern.permute.xlu0 0
        %833 = vperm.xlu0 %832, %v827
        %v834 = vpop.permute.xlu0 %833
        %v836 = vsub.f32 %v818, %v834
        %v837 = vmul.f32 %v836, 1.442695
        %v838 = vpow.pop %v837
        %v839 = vld [vmem:[#allocation4] sm:$0xff]
        %v840 = vmul.f32 %v830, %v839
        %v841 = vsel %vm776, %v838, 0.0
        %842 = vadd.xlane.f32.xlu0 %v841
        %v843 = vpop.xlane.xlu0 %842
        %v844 = vadd.f32 %v840, %v843
        %vm845 = vcmask 7168
        %846 = vst.msk [vmem:[#allocation4] sm:$0xff] %vm845, %v844
        %v847 = vld [vmem:[#allocation5] sm:$0xff]
        %849 = vset.pattern.permute.xlu0 0
        %850 = vperm.xlu0 %849, %v830
        %v851 = vpop.permute.xlu0 %850
        %v853 = vmul.f32 %v851, %v847
        %v854 = vpack.c.bf16 %v838, %v838
        %v856 = vsel %vm776, %v854, 0
        %vm858 = vcmask 1043456
        %v860 = vsel %vm858, %v774, 0
        %862 = vmatprep.subr.bf16.mxu0 0
        %863 = vmatpush1.bf16.msra.mxu0 %v860
        %864 = vmatprep.subr.bf16.mxu0 0
        %865 = vmatpush1.bf16.msra.mxu0 0
        %866 = vmatprep.subr.bf16.mxu0 0
        %867 = vmatpush1.bf16.msra.mxu0 0
        %868 = vmatprep.subr.bf16.mxu0 0
        %869 = vmatpush1.bf16.msra.mxu0 0
        %870 = vmatprep.subr.bf16.mxu0 0
        %871 = vmatpush1.bf16.msra.mxu0 0
        %872 = vmatprep.subr.bf16.mxu0 0
        %873 = vmatpush1.bf16.msra.mxu0 0
        %874 = vmatprep.subr.bf16.mxu0 0
        %875 = vmatpush1.bf16.msra.mxu0 0
        %876 = vmatprep.subr.bf16.mxu0 0
        %877 = vmatpush1.bf16.msra.mxu0 0
        %878 = vmatprep.subr.bf16.mxu0 0
        %879 = vmatpush1.bf16.msra.mxu0 0
        %880 = vmatprep.subr.bf16.mxu0 0
        %881 = vmatpush1.bf16.msra.mxu0 0
        %882 = vmatprep.subr.bf16.mxu0 0
        %883 = vmatpush1.bf16.msra.mxu0 0
        %884 = vmatprep.subr.bf16.mxu0 0
        %885 = vmatpush1.bf16.msra.mxu0 0
        %886 = vmatprep.subr.bf16.mxu0 0
        %887 = vmatpush1.bf16.msra.mxu0 0
        %888 = vmatprep.subr.bf16.mxu0 0
        %889 = vmatpush1.bf16.msra.mxu0 0
        %890 = vmatprep.subr.bf16.mxu0 0
        %891 = vmatpush1.bf16.msra.mxu0 0
        %892 = vmatprep.subr.bf16.mxu0 0
        %893 = vmatpush1.bf16.msra.mxu0 0
        %894 = vmatprep.mubr.bf16.mxu0 0
        %895 = vmatmul.mubr.bf16.gmra.mrb[0].mxu0 %v856
        %v896 = vpop.f32.mrb[0].mxu0
        %v897 = vadd.f32 0.0, %v896
        %v898 = vpop.f32.mrb[0].mxu0
        %v899 = vpop.f32.mrb[0].mxu0
        %v900 = vpop.f32.mrb[0].mxu0
        %901 = vdwg.mxu0
        %v902 = vadd.f32 %v853, %v897
        %903 = vst.msk [vmem:[#allocation5] sm:$0xff] %vm776, %v902
        %904 = vst.msk [vmem:[#allocation3] sm:$0xff] %vm845, %v827
        %v905 = vld [vmem:[#allocation2] sm:$0xf]
        %v907 = vunpack.c.l.b16 %v905
        %v908 = vpack.c.b16 %v907, %v907
        %909 = vrot.lane.b32.xlu0 %v908, 120
        %v910 = vpop.permute.xlu0 %909
        %912 = vrot.lane.b32.xlu0 %v705, 120
        %v913 = vpop.permute.xlu0 %912
        %v915 = vsel %vm776, %v910, 0
        %v918 = vsel %vm776, %v913, 0
        %920 = vmatprep.subr.bf16.mxu0 0
        %921 = vmatpush1.bf16.xpose.msra.mxu0 %v918
        %922 = vmatprep.subr.bf16.mxu0 0
        %923 = vmatpush1.bf16.xpose.msra.mxu0 0
        %924 = vmatprep.subr.bf16.mxu0 0
        %925 = vmatpush1.bf16.xpose.msra.mxu0 0
        %926 = vmatprep.subr.bf16.mxu0 0
        %927 = vmatpush1.bf16.xpose.msra.mxu0 0
        %928 = vmatprep.subr.bf16.mxu0 0
        %929 = vmatpush1.bf16.xpose.msra.mxu0 0
        %930 = vmatprep.subr.bf16.mxu0 0
        %931 = vmatpush1.bf16.xpose.msra.mxu0 0
        %932 = vmatprep.subr.bf16.mxu0 0
        %933 = vmatpush1.bf16.xpose.msra.mxu0 0
        %934 = vmatprep.subr.bf16.mxu0 0
        %935 = vmatpush1.bf16.xpose.msra.mxu0 0
        %936 = vmatprep.subr.bf16.mxu0 0
        %937 = vmatpush1.bf16.xpose.msra.mxu0 0
        %938 = vmatprep.subr.bf16.mxu0 0
        %939 = vmatpush1.bf16.xpose.msra.mxu0 0
        %940 = vmatprep.subr.bf16.mxu0 0
        %941 = vmatpush1.bf16.xpose.msra.mxu0 0
        %942 = vmatprep.subr.bf16.mxu0 0
        %943 = vmatpush1.bf16.xpose.msra.mxu0 0
        %944 = vmatprep.subr.bf16.mxu0 0
        %945 = vmatpush1.bf16.xpose.msra.mxu0 0
        %946 = vmatprep.subr.bf16.mxu0 0
        %947 = vmatpush1.bf16.xpose.msra.mxu0 0
        %948 = vmatprep.subr.bf16.mxu0 0
        %949 = vmatpush1.bf16.xpose.msra.mxu0 0
        %950 = vmatprep.subr.bf16.mxu0 0
        %951 = vmatpush1.bf16.xpose.msra.mxu0 0
        %952 = vmatprep.mubr.bf16.mxu0 0
        %953 = vmatmul.mubr.bf16.gmra.mrb[0].mxu0 %v915
        %v954 = vpop.f32.mrb[0].mxu0
        %v955 = vadd.f32 0.0, %v954
        %v956 = vpop.f32.mrb[0].mxu0
        %v957 = vpop.f32.mrb[0].mxu0
        %v958 = vpop.f32.mrb[0].mxu0
        %959 = vdwg.mxu0
        %s960 = scalar_lea.vmem [#allocation3], 8
        %v961 = vld [vmem:[%s960] sm:$0xff]
        %v962 = vsel %vm776, %v955, -inf
        %963 = vmax.xlane.f32.xlu0 %v962
        %v964 = vpop.xlane.xlu0 %963
        %v965 = vmax.f32 %v961, %v964
        %v966 = vsub.f32 %v961, %v965
        %v967 = vmul.f32 %v966, 1.442695
        %v968 = vpow.pop %v967
        %970 = vset.pattern.permute.xlu0 0
        %971 = vperm.xlu0 %970, %v965
        %v972 = vpop.permute.xlu0 %971
        %v974 = vsub.f32 %v955, %v972
        %v975 = vmul.f32 %v974, 1.442695
        %v976 = vpow.pop %v975
        %s977 = scalar_lea.vmem [#allocation4], 8
        %v978 = vld [vmem:[%s977] sm:$0xff]
        %v979 = vmul.f32 %v968, %v978
        %v980 = vsel %vm776, %v976, 0.0
        %981 = vadd.xlane.f32.xlu0 %v980
        %v982 = vpop.xlane.xlu0 %981
        %v983 = vadd.f32 %v979, %v982
        %984 = vst.msk [vmem:[%s977] sm:$0xff] %vm845, %v983
        %s985 = scalar_lea.vmem [#allocation5], 8
        %v986 = vld [vmem:[%s985] sm:$0xff]
        %988 = vset.pattern.permute.xlu0 0
        %989 = vperm.xlu0 %988, %v968
        %v990 = vpop.permute.xlu0 %989
        %v992 = vmul.f32 %v990, %v986
        %v993 = vpack.c.bf16 %v976, %v976
        %995 = vrot.lane.b32.xlu0 %v774, 120
        %v996 = vpop.permute.xlu0 %995
        %v998 = vsel %vm776, %v993, 0
        %v1001 = vsel %vm858, %v996, 0
        %1003 = vmatprep.subr.bf16.mxu0 0
        %1004 = vmatpush1.bf16.msra.mxu0 %v1001
        %1005 = vmatprep.subr.bf16.mxu0 0
        %1006 = vmatpush1.bf16.msra.mxu0 0
        %1007 = vmatprep.subr.bf16.mxu0 0
        %1008 = vmatpush1.bf16.msra.mxu0 0
        %1009 = vmatprep.subr.bf16.mxu0 0
        %1010 = vmatpush1.bf16.msra.mxu0 0
        %1011 = vmatprep.subr.bf16.mxu0 0
        %1012 = vmatpush1.bf16.msra.mxu0 0
        %1013 = vmatprep.subr.bf16.mxu0 0
        %1014 = vmatpush1.bf16.msra.mxu0 0
        %1015 = vmatprep.subr.bf16.mxu0 0
        %1016 = vmatpush1.bf16.msra.mxu0 0
        %1017 = vmatprep.subr.bf16.mxu0 0
        %1018 = vmatpush1.bf16.msra.mxu0 0
        %1019 = vmatprep.subr.bf16.mxu0 0
        %1020 = vmatpush1.bf16.msra.mxu0 0
        %1021 = vmatprep.subr.bf16.mxu0 0
        %1022 = vmatpush1.bf16.msra.mxu0 0
        %1023 = vmatprep.subr.bf16.mxu0 0
        %1024 = vmatpush1.bf16.msra.mxu0 0
        %1025 = vmatprep.subr.bf16.mxu0 0
        %1026 = vmatpush1.bf16.msra.mxu0 0
        %1027 = vmatprep.subr.bf16.mxu0 0
        %1028 = vmatpush1.bf16.msra.mxu0 0
        %1029 = vmatprep.subr.bf16.mxu0 0
        %1030 = vmatpush1.bf16.msra.mxu0 0
        %1031 = vmatprep.subr.bf16.mxu0 0
        %1032 = vmatpush1.bf16.msra.mxu0 0
        %1033 = vmatprep.subr.bf16.mxu0 0
        %1034 = vmatpush1.bf16.msra.mxu0 0
        %1035 = vmatprep.mubr.bf16.mxu0 0
        %1036 = vmatmul.mubr.bf16.gmra.mrb[0].mxu0 %v998
        %v1037 = vpop.f32.mrb[0].mxu0
        %v1038 = vadd.f32 0.0, %v1037
        %v1039 = vpop.f32.mrb[0].mxu0
        %v1040 = vpop.f32.mrb[0].mxu0
        %v1041 = vpop.f32.mrb[0].mxu0
        %1042 = vdwg.mxu0
        %v1043 = vadd.f32 %v992, %v1038
        %1044 = vst.msk [vmem:[%s985] sm:$0xff] %vm776, %v1043
        %1045 = vst.msk [vmem:[%s960] sm:$0xff] %vm845, %v965
        %v1046 = vld [vmem:[#allocation2] sm:$0xf]
        %v1048 = vunpack.c.l.b16 %v1046
        %v1049 = vpack.c.b16 %v1048, %v1048
        %1050 = vrot.lane.b32.xlu0 %v1049, 112
        %v1051 = vpop.permute.xlu0 %1050
        %1052 = vrot.lane.b32.xlu0 %v705, 112
        %v1053 = vpop.permute.xlu0 %1052
        %v1055 = vsel %vm776, %v1051, 0
        %v1058 = vsel %vm776, %v1053, 0
        %1060 = vmatprep.subr.bf16.mxu0 0
        %1061 = vmatpush1.bf16.xpose.msra.mxu0 %v1058
        %1062 = vmatprep.subr.bf16.mxu0 0
        %1063 = vmatpush1.bf16.xpose.msra.mxu0 0
        %1064 = vmatprep.subr.bf16.mxu0 0
        %1065 = vmatpush1.bf16.xpose.msra.mxu0 0
        %1066 = vmatprep.subr.bf16.mxu0 0
        %1067 = vmatpush1.bf16.xpose.msra.mxu0 0
        %1068 = vmatprep.subr.bf16.mxu0 0
        %1069 = vmatpush1.bf16.xpose.msra.mxu0 0
        %1070 = vmatprep.subr.bf16.mxu0 0
        %1071 = vmatpush1.bf16.xpose.msra.mxu0 0
        %1072 = vmatprep.subr.bf16.mxu0 0
        %1073 = vmatpush1.bf16.xpose.msra.mxu0 0
        %1074 = vmatprep.subr.bf16.mxu0 0
        %1075 = vmatpush1.bf16.xpose.msra.mxu0 0
        %1076 = vmatprep.subr.bf16.mxu0 0
        %1077 = vmatpush1.bf16.xpose.msra.mxu0 0
        %1078 = vmatprep.subr.bf16.mxu0 0
        %1079 = vmatpush1.bf16.xpose.msra.mxu0 0
        %1080 = vmatprep.subr.bf16.mxu0 0
        %1081 = vmatpush1.bf16.xpose.msra.mxu0 0
        %1082 = vmatprep.subr.bf16.mxu0 0
        %1083 = vmatpush1.bf16.xpose.msra.mxu0 0
        %1084 = vmatprep.subr.bf16.mxu0 0
        %1085 = vmatpush1.bf16.xpose.msra.mxu0 0
        %1086 = vmatprep.subr.bf16.mxu0 0
        %1087 = vmatpush1.bf16.xpose.msra.mxu0 0
        %1088 = vmatprep.subr.bf16.mxu0 0
        %1089 = vmatpush1.bf16.xpose.msra.mxu0 0
        %1090 = vmatprep.subr.bf16.mxu0 0
        %1091 = vmatpush1.bf16.xpose.msra.mxu0 0
        %1092 = vmatprep.mubr.bf16.mxu0 0
        %1093 = vmatmul.mubr.bf16.gmra.mrb[0].mxu0 %v1055
        %v1094 = vpop.f32.mrb[0].mxu0
        %v1095 = vadd.f32 0.0, %v1094
        %v1096 = vpop.f32.mrb[0].mxu0
        %v1097 = vpop.f32.mrb[0].mxu0
        %v1098 = vpop.f32.mrb[0].mxu0
        %1099 = vdwg.mxu0
        %s1100 = scalar_lea.vmem [#allocation3], 16
        %v1101 = vld [vmem:[%s1100] sm:$0xff]
        %v1102 = vsel %vm776, %v1095, -inf
        %1103 = vmax.xlane.f32.xlu0 %v1102
        %v1104 = vpop.xlane.xlu0 %1103
        %v1105 = vmax.f32 %v1101, %v1104
        %v1106 = vsub.f32 %v1101, %v1105
        %v1107 = vmul.f32 %v1106, 1.442695
        %v1108 = vpow.pop %v1107
        %1110 = vset.pattern.permute.xlu0 0
        %1111 = vperm.xlu0 %1110, %v1105
        %v1112 = vpop.permute.xlu0 %1111
        %v1114 = vsub.f32 %v1095, %v1112
        %v1115 = vmul.f32 %v1114, 1.442695
        %v1116 = vpow.pop %v1115
        %s1117 = scalar_lea.vmem [#allocation4], 16
        %v1118 = vld [vmem:[%s1117] sm:$0xff]
        %v1119 = vmul.f32 %v1108, %v1118
        %v1120 = vsel %vm776, %v1116, 0.0
        %1121 = vadd.xlane.f32.xlu0 %v1120
        %v1122 = vpop.xlane.xlu0 %1121
        %v1123 = vadd.f32 %v1119, %v1122
        %1124 = vst.msk [vmem:[%s1117] sm:$0xff] %vm845, %v1123
        %s1125 = scalar_lea.vmem [#allocation5], 16
        %v1126 = vld [vmem:[%s1125] sm:$0xff]
        %1128 = vset.pattern.permute.xlu0 0
        %1129 = vperm.xlu0 %1128, %v1108
        %v1130 = vpop.permute.xlu0 %1129
        %v1132 = vmul.f32 %v1130, %v1126
        %v1133 = vpack.c.bf16 %v1116, %v1116
        %1134 = vrot.lane.b32.xlu0 %v774, 112
        %v1135 = vpop.permute.xlu0 %1134
        %v1137 = vsel %vm776, %v1133, 0
        %v1140 = vsel %vm858, %v1135, 0
        %1142 = vmatprep.subr.bf16.mxu0 0
        %1143 = vmatpush1.bf16.msra.mxu0 %v1140
        %1144 = vmatprep.subr.bf16.mxu0 0
        %1145 = vmatpush1.bf16.msra.mxu0 0
        %1146 = vmatprep.subr.bf16.mxu0 0
        %1147 = vmatpush1.bf16.msra.mxu0 0
        %1148 = vmatprep.subr.bf16.mxu0 0
        %1149 = vmatpush1.bf16.msra.mxu0 0
        %1150 = vmatprep.subr.bf16.mxu0 0
        %1151 = vmatpush1.bf16.msra.mxu0 0
        %1152 = vmatprep.subr.bf16.mxu0 0
        %1153 = vmatpush1.bf16.msra.mxu0 0
        %1154 = vmatprep.subr.bf16.mxu0 0
        %1155 = vmatpush1.bf16.msra.mxu0 0
        %1156 = vmatprep.subr.bf16.mxu0 0
        %1157 = vmatpush1.bf16.msra.mxu0 0
        %1158 = vmatprep.subr.bf16.mxu0 0
        %1159 = vmatpush1.bf16.msra.mxu0 0
        %1160 = vmatprep.subr.bf16.mxu0 0
        %1161 = vmatpush1.bf16.msra.mxu0 0
        %1162 = vmatprep.subr.bf16.mxu0 0
        %1163 = vmatpush1.bf16.msra.mxu0 0
        %1164 = vmatprep.subr.bf16.mxu0 0
        %1165 = vmatpush1.bf16.msra.mxu0 0
        %1166 = vmatprep.subr.bf16.mxu0 0
        %1167 = vmatpush1.bf16.msra.mxu0 0
        %1168 = vmatprep.subr.bf16.mxu0 0
        %1169 = vmatpush1.bf16.msra.mxu0 0
        %1170 = vmatprep.subr.bf16.mxu0 0
        %1171 = vmatpush1.bf16.msra.mxu0 0
        %1172 = vmatprep.subr.bf16.mxu0 0
        %1173 = vmatpush1.bf16.msra.mxu0 0
        %1174 = vmatprep.mubr.bf16.mxu0 0
        %1175 = vmatmul.mubr.bf16.gmra.mrb[0].mxu0 %v1137
        %v1176 = vpop.f32.mrb[0].mxu0
        %v1177 = vadd.f32 0.0, %v1176
        %v1178 = vpop.f32.mrb[0].mxu0
        %v1179 = vpop.f32.mrb[0].mxu0
        %v1180 = vpop.f32.mrb[0].mxu0
        %1181 = vdwg.mxu0
        %v1182 = vadd.f32 %v1132, %v1177
        %1183 = vst.msk [vmem:[%s1125] sm:$0xff] %vm776, %v1182
        %1184 = vst.msk [vmem:[%s1100] sm:$0xff] %vm845, %v1105
        %v1185 = vld [vmem:[#allocation2] sm:$0xf]
        %v1187 = vunpack.c.l.b16 %v1185
        %v1188 = vpack.c.b16 %v1187, %v1187
        %1189 = vrot.lane.b32.xlu0 %v1188, 104
        %v1190 = vpop.permute.xlu0 %1189
        %1191 = vrot.lane.b32.xlu0 %v705, 104
        %v1192 = vpop.permute.xlu0 %1191
        %v1194 = vsel %vm776, %v1190, 0
        %v1197 = vsel %vm776, %v1192, 0
        %1199 = vmatprep.subr.bf16.mxu0 0
        %1200 = vmatpush1.bf16.xpose.msra.mxu0 %v1197
        %1201 = vmatprep.subr.bf16.mxu0 0
        %1202 = vmatpush1.bf16.xpose.msra.mxu0 0
        %1203 = vmatprep.subr.bf16.mxu0 0
        %1204 = vmatpush1.bf16.xpose.msra.mxu0 0
        %1205 = vmatprep.subr.bf16.mxu0 0
        %1206 = vmatpush1.bf16.xpose.msra.mxu0 0
        %1207 = vmatprep.subr.bf16.mxu0 0
        %1208 = vmatpush1.bf16.xpose.msra.mxu0 0
        %1209 = vmatprep.subr.bf16.mxu0 0
        %1210 = vmatpush1.bf16.xpose.msra.mxu0 0
        %1211 = vmatprep.subr.bf16.mxu0 0
        %1212 = vmatpush1.bf16.xpose.msra.mxu0 0
        %1213 = vmatprep.subr.bf16.mxu0 0
        %1214 = vmatpush1.bf16.xpose.msra.mxu0 0
        %1215 = vmatprep.subr.bf16.mxu0 0
        %1216 = vmatpush1.bf16.xpose.msra.mxu0 0
        %1217 = vmatprep.subr.bf16.mxu0 0
        %1218 = vmatpush1.bf16.xpose.msra.mxu0 0
        %1219 = vmatprep.subr.bf16.mxu0 0
        %1220 = vmatpush1.bf16.xpose.msra.mxu0 0
        %1221 = vmatprep.subr.bf16.mxu0 0
        %1222 = vmatpush1.bf16.xpose.msra.mxu0 0
        %1223 = vmatprep.subr.bf16.mxu0 0
        %1224 = vmatpush1.bf16.xpose.msra.mxu0 0
        %1225 = vmatprep.subr.bf16.mxu0 0
        %1226 = vmatpush1.bf16.xpose.msra.mxu0 0
        %1227 = vmatprep.subr.bf16.mxu0 0
        %1228 = vmatpush1.bf16.xpose.msra.mxu0 0
        %1229 = vmatprep.subr.bf16.mxu0 0
        %1230 = vmatpush1.bf16.xpose.msra.mxu0 0
        %1231 = vmatprep.mubr.bf16.mxu0 0
        %1232 = vmatmul.mubr.bf16.gmra.mrb[0].mxu0 %v1194
        %v1233 = vpop.f32.mrb[0].mxu0
        %v1234 = vadd.f32 0.0, %v1233
        %v1235 = vpop.f32.mrb[0].mxu0
        %v1236 = vpop.f32.mrb[0].mxu0
        %v1237 = vpop.f32.mrb[0].mxu0
        %1238 = vdwg.mxu0
        %s1239 = scalar_lea.vmem [#allocation3], 24
        %v1240 = vld [vmem:[%s1239] sm:$0xff]
        %v1241 = vsel %vm776, %v1234, -inf
        %1242 = vmax.xlane.f32.xlu0 %v1241
        %v1243 = vpop.xlane.xlu0 %1242
        %v1244 = vmax.f32 %v1240, %v1243
        %v1245 = vsub.f32 %v1240, %v1244
        %v1246 = vmul.f32 %v1245, 1.442695
        %v1247 = vpow.pop %v1246
        %1249 = vset.pattern.permute.xlu0 0
        %1250 = vperm.xlu0 %1249, %v1244
        %v1251 = vpop.permute.xlu0 %1250
        %v1253 = vsub.f32 %v1234, %v1251
        %v1254 = vmul.f32 %v1253, 1.442695
        %v1255 = vpow.pop %v1254
        %s1256 = scalar_lea.vmem [#allocation4], 24
        %v1257 = vld [vmem:[%s1256] sm:$0xff]
        %v1258 = vmul.f32 %v1247, %v1257
        %v1259 = vsel %vm776, %v1255, 0.0
        %1260 = vadd.xlane.f32.xlu0 %v1259
        %v1261 = vpop.xlane.xlu0 %1260
        %v1262 = vadd.f32 %v1258, %v1261
        %1263 = vst.msk [vmem:[%s1256] sm:$0xff] %vm845, %v1262
        %s1264 = scalar_lea.vmem [#allocation5], 24
        %v1265 = vld [vmem:[%s1264] sm:$0xff]
        %1267 = vset.pattern.permute.xlu0 0
        %1268 = vperm.xlu0 %1267, %v1247
        %v1269 = vpop.permute.xlu0 %1268
        %v1271 = vmul.f32 %v1269, %v1265
        %v1272 = vpack.c.bf16 %v1255, %v1255
        %1273 = vrot.lane.b32.xlu0 %v774, 104
        %v1274 = vpop.permute.xlu0 %1273
        %v1276 = vsel %vm776, %v1272, 0
        %v1279 = vsel %vm858, %v1274, 0
        %1281 = vmatprep.subr.bf16.mxu0 0
        %1282 = vmatpush1.bf16.msra.mxu0 %v1279
        %1283 = vmatprep.subr.bf16.mxu0 0
        %1284 = vmatpush1.bf16.msra.mxu0 0
        %1285 = vmatprep.subr.bf16.mxu0 0
        %1286 = vmatpush1.bf16.msra.mxu0 0
        %1287 = vmatprep.subr.bf16.mxu0 0
        %1288 = vmatpush1.bf16.msra.mxu0 0
        %1289 = vmatprep.subr.bf16.mxu0 0
        %1290 = vmatpush1.bf16.msra.mxu0 0
        %1291 = vmatprep.subr.bf16.mxu0 0
        %1292 = vmatpush1.bf16.msra.mxu0 0
        %1293 = vmatprep.subr.bf16.mxu0 0
        %1294 = vmatpush1.bf16.msra.mxu0 0
        %1295 = vmatprep.subr.bf16.mxu0 0
        %1296 = vmatpush1.bf16.msra.mxu0 0
        %1297 = vmatprep.subr.bf16.mxu0 0
        %1298 = vmatpush1.bf16.msra.mxu0 0
        %1299 = vmatprep.subr.bf16.mxu0 0
        %1300 = vmatpush1.bf16.msra.mxu0 0
        %1301 = vmatprep.subr.bf16.mxu0 0
        %1302 = vmatpush1.bf16.msra.mxu0 0
        %1303 = vmatprep.subr.bf16.mxu0 0
        %1304 = vmatpush1.bf16.msra.mxu0 0
        %1305 = vmatprep.subr.bf16.mxu0 0
        %1306 = vmatpush1.bf16.msra.mxu0 0
        %1307 = vmatprep.subr.bf16.mxu0 0
        %1308 = vmatpush1.bf16.msra.mxu0 0
        %1309 = vmatprep.subr.bf16.mxu0 0
        %1310 = vmatpush1.bf16.msra.mxu0 0
        %1311 = vmatprep.subr.bf16.mxu0 0
        %1312 = vmatpush1.bf16.msra.mxu0 0
        %1313 = vmatprep.mubr.bf16.mxu0 0
        %1314 = vmatmul.mubr.bf16.gmra.mrb[0].mxu0 %v1276
        %v1315 = vpop.f32.mrb[0].mxu0
        %v1316 = vadd.f32 0.0, %v1315
        %v1317 = vpop.f32.mrb[0].mxu0
        %v1318 = vpop.f32.mrb[0].mxu0
        %v1319 = vpop.f32.mrb[0].mxu0
        %1320 = vdwg.mxu0
        %v1321 = vadd.f32 %v1271, %v1316
        %1322 = vst.msk [vmem:[%s1264] sm:$0xff] %vm776, %v1321
        %1323 = vst.msk [vmem:[%s1239] sm:$0xff] %vm845, %v1244
        // Predicated region
        $region93: #{tpu_custom_call.1} parent=63 // pred_check
          %p1324 = pneg %p546
        $region94: #{tpu_custom_call.1} parent=63 // pred_check_branch
          %1326 = sbr.rel (%p1324) target = $region96
        $region95: #{tpu_custom_call.1} parent=63 // pred_region
          %v1327 = vld [vmem:[#allocation4] sm:$0xff]
          %v1328 = vrcp.pop %v1327
          %v1329 = vld [vmem:[#allocation5] sm:$0xff]
          %1331 = vset.pattern.permute.xlu0 0
          %1332 = vperm.xlu0 %1331, %v1328
          %v1333 = vpop.permute.xlu0 %1332
          %v1335 = vmul.f32 %v1329, %v1333
          %v1336 = vpack.c.bf16 %v1335, %v1335
          %v1337 = vld [vmem:[%s9] sm:$0xf]
          %v1338 = vld [vmem:[%s977] sm:$0xff]
          %v1339 = vrcp.pop %v1338
          %v1340 = vld [vmem:[%s985] sm:$0xff]
          %1342 = vset.pattern.permute.xlu0 0
          %1343 = vperm.xlu0 %1342, %v1339
          %v1344 = vpop.permute.xlu0 %1343
          %v1346 = vmul.f32 %v1340, %v1344
          %v1347 = vpack.c.bf16 %v1346, %v1346
          %v1348 = vld [vmem:[%s9 + $0x4] sm:$0xf]
          %v1350 = vsel %vm776, %v1347, 0
          %v1353 = vsel %vm858, %v1348, 0
          %1355 = vmatprep.subr.bf16.mxu0 0
          %1356 = vmatpush1.bf16.msra.mxu0 %v1353
          %1357 = vmatprep.subr.bf16.mxu0 0
          %1358 = vmatpush1.bf16.msra.mxu0 0
          %1359 = vmatprep.subr.bf16.mxu0 0
          %1360 = vmatpush1.bf16.msra.mxu0 0
          %1361 = vmatprep.subr.bf16.mxu0 0
          %1362 = vmatpush1.bf16.msra.mxu0 0
          %1363 = vmatprep.subr.bf16.mxu0 0
          %1364 = vmatpush1.bf16.msra.mxu0 0
          %1365 = vmatprep.subr.bf16.mxu0 0
          %1366 = vmatpush1.bf16.msra.mxu0 0
          %1367 = vmatprep.subr.bf16.mxu0 0
          %1368 = vmatpush1.bf16.msra.mxu0 0
          %1369 = vmatprep.subr.bf16.mxu0 0
          %1370 = vmatpush1.bf16.msra.mxu0 0
          %1371 = vmatprep.subr.bf16.mxu0 0
          %1372 = vmatpush1.bf16.msra.mxu0 0
          %1373 = vmatprep.subr.bf16.mxu0 0
          %1374 = vmatpush1.bf16.msra.mxu0 0
          %1375 = vmatprep.subr.bf16.mxu0 0
          %1376 = vmatpush1.bf16.msra.mxu0 0
          %1377 = vmatprep.subr.bf16.mxu0 0
          %1378 = vmatpush1.bf16.msra.mxu0 0
          %1379 = vmatprep.subr.bf16.mxu0 0
          %1380 = vmatpush1.bf16.msra.mxu0 0
          %1381 = vmatprep.subr.bf16.mxu0 0
          %1382 = vmatpush1.bf16.msra.mxu0 0
          %1383 = vmatprep.subr.bf16.mxu0 0
          %1384 = vmatpush1.bf16.msra.mxu0 0
          %1385 = vmatprep.subr.bf16.mxu0 0
          %1386 = vmatpush1.bf16.msra.mxu0 0
          %1387 = vmatprep.mubr.bf16.mxu0 0
          %1388 = vmatmul.mubr.bf16.gmra.mrb[0].mxu0 %v1350
          %v1389 = vpop.f32.mrb[0].mxu0
          %v1390 = vadd.f32 0.0, %v1389
          %v1391 = vpop.f32.mrb[0].mxu0
          %v1392 = vpop.f32.mrb[0].mxu0
          %v1393 = vpop.f32.mrb[0].mxu0
          %1394 = vdwg.mxu0
          %v1396 = vsel %vm776, %v1336, 0
          %v1399 = vsel %vm858, %v1337, 0
          %1401 = vmatprep.subr.bf16.mxu0 0
          %1402 = vmatpush1.bf16.msra.mxu0 %v1399
          %1403 = vmatprep.subr.bf16.mxu0 0
          %1404 = vmatpush1.bf16.msra.mxu0 0
          %1405 = vmatprep.subr.bf16.mxu0 0
          %1406 = vmatpush1.bf16.msra.mxu0 0
          %1407 = vmatprep.subr.bf16.mxu0 0
          %1408 = vmatpush1.bf16.msra.mxu0 0
          %1409 = vmatprep.subr.bf16.mxu0 0
          %1410 = vmatpush1.bf16.msra.mxu0 0
          %1411 = vmatprep.subr.bf16.mxu0 0
          %1412 = vmatpush1.bf16.msra.mxu0 0
          %1413 = vmatprep.subr.bf16.mxu0 0
          %1414 = vmatpush1.bf16.msra.mxu0 0
          %1415 = vmatprep.subr.bf16.mxu0 0
          %1416 = vmatpush1.bf16.msra.mxu0 0
          %1417 = vmatprep.subr.bf16.mxu0 0
          %1418 = vmatpush1.bf16.msra.mxu0 0
          %1419 = vmatprep.subr.bf16.mxu0 0
          %1420 = vmatpush1.bf16.msra.mxu0 0
          %1421 = vmatprep.subr.bf16.mxu0 0
          %1422 = vmatpush1.bf16.msra.mxu0 0
          %1423 = vmatprep.subr.bf16.mxu0 0
          %1424 = vmatpush1.bf16.msra.mxu0 0
          %1425 = vmatprep.subr.bf16.mxu0 0
          %1426 = vmatpush1.bf16.msra.mxu0 0
          %1427 = vmatprep.subr.bf16.mxu0 0
          %1428 = vmatpush1.bf16.msra.mxu0 0
          %1429 = vmatprep.subr.bf16.mxu0 0
          %1430 = vmatpush1.bf16.msra.mxu0 0
          %1431 = vmatprep.subr.bf16.mxu0 0
          %1432 = vmatpush1.bf16.msra.mxu0 0
          %1433 = vmatprep.mubr.bf16.mxu0 0
          %1434 = vmatmul.mubr.bf16.gmra.mrb[0].mxu0 %v1396
          %v1435 = vpop.f32.mrb[0].mxu0
          %v1436 = vadd.f32 %v1390, %v1435
          %v1437 = vpop.f32.mrb[0].mxu0
          %v1438 = vpop.f32.mrb[0].mxu0
          %v1439 = vpop.f32.mrb[0].mxu0
          %1440 = vdwg.mxu0
          %v1441 = vld [vmem:[%s1117] sm:$0xff]
          %v1442 = vrcp.pop %v1441
          %v1443 = vld [vmem:[%s1125] sm:$0xff]
          %1445 = vset.pattern.permute.xlu0 0
          %1446 = vperm.xlu0 %1445, %v1442
          %v1447 = vpop.permute.xlu0 %1446
          %v1449 = vmul.f32 %v1443, %v1447
          %v1450 = vpack.c.bf16 %v1449, %v1449
          %v1451 = vld [vmem:[%s9 + $0x8] sm:$0xf]
          %v1453 = vsel %vm776, %v1450, 0
          %v1456 = vsel %vm858, %v1451, 0
          %1458 = vmatprep.subr.bf16.mxu0 0
          %1459 = vmatpush1.bf16.msra.mxu0 %v1456
          %1460 = vmatprep.subr.bf16.mxu0 0
          %1461 = vmatpush1.bf16.msra.mxu0 0
          %1462 = vmatprep.subr.bf16.mxu0 0
          %1463 = vmatpush1.bf16.msra.mxu0 0
          %1464 = vmatprep.subr.bf16.mxu0 0
          %1465 = vmatpush1.bf16.msra.mxu0 0
          %1466 = vmatprep.subr.bf16.mxu0 0
          %1467 = vmatpush1.bf16.msra.mxu0 0
          %1468 = vmatprep.subr.bf16.mxu0 0
          %1469 = vmatpush1.bf16.msra.mxu0 0
          %1470 = vmatprep.subr.bf16.mxu0 0
          %1471 = vmatpush1.bf16.msra.mxu0 0
          %1472 = vmatprep.subr.bf16.mxu0 0
          %1473 = vmatpush1.bf16.msra.mxu0 0
          %1474 = vmatprep.subr.bf16.mxu0 0
          %1475 = vmatpush1.bf16.msra.mxu0 0
          %1476 = vmatprep.subr.bf16.mxu0 0
          %1477 = vmatpush1.bf16.msra.mxu0 0
          %1478 = vmatprep.subr.bf16.mxu0 0
          %1479 = vmatpush1.bf16.msra.mxu0 0
          %1480 = vmatprep.subr.bf16.mxu0 0
          %1481 = vmatpush1.bf16.msra.mxu0 0
          %1482 = vmatprep.subr.bf16.mxu0 0
          %1483 = vmatpush1.bf16.msra.mxu0 0
          %1484 = vmatprep.subr.bf16.mxu0 0
          %1485 = vmatpush1.bf16.msra.mxu0 0
          %1486 = vmatprep.subr.bf16.mxu0 0
          %1487 = vmatpush1.bf16.msra.mxu0 0
          %1488 = vmatprep.subr.bf16.mxu0 0
          %1489 = vmatpush1.bf16.msra.mxu0 0
          %1490 = vmatprep.mubr.bf16.mxu0 0
          %1491 = vmatmul.mubr.bf16.gmra.mrb[0].mxu0 %v1453
          %v1492 = vpop.f32.mrb[0].mxu0
          %v1493 = vadd.f32 0.0, %v1492
          %v1494 = vpop.f32.mrb[0].mxu0
          %v1495 = vpop.f32.mrb[0].mxu0
          %v1496 = vpop.f32.mrb[0].mxu0
          %1497 = vdwg.mxu0
          %v1498 = vadd.f32 %v1436, %v1493
          %v1499 = vld [vmem:[%s1256] sm:$0xff]
          %v1500 = vrcp.pop %v1499
          %v1501 = vld [vmem:[%s1264] sm:$0xff]
          %1503 = vset.pattern.permute.xlu0 0
          %1504 = vperm.xlu0 %1503, %v1500
          %v1505 = vpop.permute.xlu0 %1504
          %v1507 = vmul.f32 %v1501, %v1505
          %v1508 = vpack.c.bf16 %v1507, %v1507
          %v1509 = vld [vmem:[%s9 + $0xc] sm:$0xf]
          %v1511 = vsel %vm776, %v1508, 0
          %v1514 = vsel %vm858, %v1509, 0
          %1516 = vmatprep.subr.bf16.mxu0 0
          %1517 = vmatpush1.bf16.msra.mxu0 %v1514
          %1518 = vmatprep.subr.bf16.mxu0 0
          %1519 = vmatpush1.bf16.msra.mxu0 0
          %1520 = vmatprep.subr.bf16.mxu0 0
          %1521 = vmatpush1.bf16.msra.mxu0 0
          %1522 = vmatprep.subr.bf16.mxu0 0
          %1523 = vmatpush1.bf16.msra.mxu0 0
          %1524 = vmatprep.subr.bf16.mxu0 0
          %1525 = vmatpush1.bf16.msra.mxu0 0
          %1526 = vmatprep.subr.bf16.mxu0 0
          %1527 = vmatpush1.bf16.msra.mxu0 0
          %1528 = vmatprep.subr.bf16.mxu0 0
          %1529 = vmatpush1.bf16.msra.mxu0 0
          %1530 = vmatprep.subr.bf16.mxu0 0
          %1531 = vmatpush1.bf16.msra.mxu0 0
          %1532 = vmatprep.subr.bf16.mxu0 0
          %1533 = vmatpush1.bf16.msra.mxu0 0
          %1534 = vmatprep.subr.bf16.mxu0 0
          %1535 = vmatpush1.bf16.msra.mxu0 0
          %1536 = vmatprep.subr.bf16.mxu0 0
          %1537 = vmatpush1.bf16.msra.mxu0 0
          %1538 = vmatprep.subr.bf16.mxu0 0
          %1539 = vmatpush1.bf16.msra.mxu0 0
          %1540 = vmatprep.subr.bf16.mxu0 0
          %1541 = vmatpush1.bf16.msra.mxu0 0
          %1542 = vmatprep.subr.bf16.mxu0 0
          %1543 = vmatpush1.bf16.msra.mxu0 0
          %1544 = vmatprep.subr.bf16.mxu0 0
          %1545 = vmatpush1.bf16.msra.mxu0 0
          %1546 = vmatprep.subr.bf16.mxu0 0
          %1547 = vmatpush1.bf16.msra.mxu0 0
          %1548 = vmatprep.mubr.bf16.mxu0 0
          %1549 = vmatmul.mubr.bf16.gmra.mrb[0].mxu0 %v1511
          %v1550 = vpop.f32.mrb[0].mxu0
          %v1551 = vadd.f32 0.0, %v1550
          %v1552 = vpop.f32.mrb[0].mxu0
          %v1553 = vpop.f32.mrb[0].mxu0
          %v1554 = vpop.f32.mrb[0].mxu0
          %1555 = vdwg.mxu0
          %v1556 = vadd.f32 %v1498, %v1551
          %v1557 = vld [vmem:[%s10] sm:$0x1]
          %v1559 = vlaneseq
          %v1560 = vshrl.u32 %v1559, 7
          %v1561 = vsub.s32 0, %v1560
          %v1562 = vrot.slane %v1557, %v1561
          %v1564 = vadd.f32 %v1556, %v1562
          %1565 = vst.msk [vmem:[%s544] sm:$0xff] %vm661, %v1564
        $region96: #{tpu_custom_call.1} parent=63 // pred_fallthru
          _
        %s1566 = sand.u32 %s314, 1
        %s1567 = scalar_lea.sflag [#allocation8], %s1566
        %s1568 = sand.u32 %s314, 1
        %s1569 = smul.addr %s1568, 8
        %s1570 = scalar_lea.vmem [#allocation17], %s1569
        // Predicated region
        $region97: #{tpu_custom_call.1} parent=63 // pred_check
          %p1571 = pneg %p324
        $region98: #{tpu_custom_call.1} parent=63 // pred_check_branch
          %1573 = sbr.rel (%p1571) target = $region100
        $region99: #{tpu_custom_call.1} parent=63 // pred_region
          %s1575 = ssub.s32 128, 128
          %1576 = vsyncadd %s1567, %s1575
          %s1577 = sadd.s32 %s39, %s38
          %s1578 = smul.addr %s1577, 128
          %s1579 = scalar_lea.hbm %s11, %s1578
          %s1581 = sshll.u32 %s1570, 4
          %s1582 = int_to_ptr.vmem [resolvable:$true] %s1581
          %1584 = dma.vmem_to_hbm [thread:$0]  %s1582, 128, %s1579, %s1567
        $region100: #{tpu_custom_call.1} parent=63 // pred_fallthru
          _
      $region64: #{tpu_custom_call.1} parent=5 // pred_fallthru
        _
      %p1585 = scmp.le.s32.totalorder 2, %s28
      // Predicated region
      $region101: #{tpu_custom_call.1} parent=5 // pred_check
        %p1586 = pneg %p1585
      $region102: #{tpu_custom_call.1} parent=5 // pred_check_branch
        %1588 = sbr.rel (%p1586) target = $region104
      $region103: #{tpu_custom_call.1} parent=5 // pred_region
        %s1589 = ssub.s32 %s28, 2
        // Predicated region
        $region105: #{tpu_custom_call.1} parent=103 // pred_check
          %p1590 = pneg %p330
        $region106: #{tpu_custom_call.1} parent=103 // pred_check_branch
          %1592 = sbr.rel (%p1590) target = $region108
        $region107: #{tpu_custom_call.1} parent=103 // pred_region
          %s1593 = sand.u32 %s315, 1
          %s1594 = scalar_lea.sflag [#allocation8], %s1593
          %s1595 = sand.u32 %s315, 1
          %s1596 = smul.addr %s1595, 8
          %s1597 = scalar_lea.vmem [#allocation17], %s1596
          %1598 = dma.done %s1594, 128
        $region108: #{tpu_custom_call.1} parent=103 // pred_fallthru
          _
      $region104: #{tpu_custom_call.1} parent=5 // pred_fallthru
        _
    $region6: #{tpu_custom_call.1} parent=1 // loop_footer
      %s32 = sadd.s32 1, %s28
    $region7: #{tpu_custom_call.1} parent=1 // loop_footer_branch
      %27 = sbr.rel target = $region3
    $region8: #{tpu_custom_call.1} parent=1 // loop_exit
      _
    %1599 = vsyncpa [#allocation7], 1
    %s1600 = scalar_lea.sflag [#allocation7], 1
    %1601 = vsyncpa %s1600, 1
    %1602 = vsyncpa [#allocation10], 1
    %s1603 = scalar_lea.sflag [#allocation10], 1
    %1604 = vsyncpa %s1603, 1
    %1605 = vsyncpa [#allocation13], 1
    %1606 = vsyncpa [#allocation16], 1
    %1607 = vsyncpa [#allocation8], 1
    %s1608 = scalar_lea.sflag [#allocation8], 1
    %1609 = vsyncpa %s1608, 1

</llo_original>
